<compile_context>
chip_gen: v7x
topology: tpu7x:2x2x1
jax: 0.10.0
libtpu: 0.0.40
codegen_flags: <defaults>
</compile_context>

<pallas_src>
import numpy as np
import jax
import jax.numpy as jnp
from jax.experimental import pallas as pl
from jax.experimental.pallas import tpu as pltpu


# ---------------------------------------------------------------------------
# host-side constants / parameter fusion (O(K*D) work, negligible)
# ---------------------------------------------------------------------------

def build_pixel_xy(img_h, img_w, feat_h, feat_w):
    """Per-pixel (x, y) image-plane coordinates, each as an [HW, 1] column.

    Matches the registered `image_plane` buffer of the PyTorch module:
    channel 0 = coords_w[w] (x), channel 1 = coords_h[h] (y).
    """
    scale = img_h // feat_h
    coords_h = np.linspace(scale // 2, img_h - scale // 2, feat_h)
    coords_w = np.linspace(scale // 2, img_w - scale // 2, feat_w)
    xx = np.broadcast_to(coords_w[None, :], (feat_h, feat_w))
    yy = np.broadcast_to(coords_h[:, None], (feat_h, feat_w))
    x = np.asarray(xx, np.float32).reshape(feat_h * feat_w, 1)
    y = np.asarray(yy, np.float32).reshape(feat_h * feat_w, 1)
    return x, y


def fuse_camera_matrices(I_inv, E_inv, w_img, w_cam):
    """Fold W_img ∘ E_inv ∘ [I_inv ; 1] and the c_embed subtraction into three
    per-camera rows B[k] in R^{3 x D}:

        img_embed_pre[k, p, :] = x_p * B[k,0,:] + y_p * B[k,1,:] + B[k,2,:]

    where B[k,2,:] carries the homogeneous-1 column, the extrinsic translation
    through W_img, and the -W_cam @ t (c_embed) term.

    I_inv: [K,3,3], E_inv: [K,4,4], w_img/w_cam: [D,4]  ->  B: [K,3,D]
    """
    E3 = E_inv[:, :, :3]                                     # [K,4,3]
    t = E_inv[:, :, 3]                                       # [K,4]  (camera center col)
    # (W_img @ E3 @ I_inv)^T per camera -> [K,3,D] (rows indexed by pixel coord j)
    A = jnp.einsum('dc,kci,kij->kjd', w_img, E3, I_inv)
    # translation through W_img minus the c_embed term (W_cam @ t) -> [K,D]
    bias = jnp.einsum('dc,kc->kd', w_img - w_cam, t)
    bias_row = (A[:, 2, :] + bias)[:, None, :]               # fold hom.-1 column + bias
    return jnp.concatenate([A[:, :2, :], bias_row], axis=1)  # [K,3,D]


def _choose_tile(hw, max_tile=4096):
    """Largest spatial tile (multiple of 8) dividing HW, capped at max_tile."""
    if hw <= max_tile:
        return hw
    start = max_tile - (max_tile % 8)
    for t in range(start, 7, -8):
        if hw % t == 0:
            return t
    return hw


# ---------------------------------------------------------------------------
# Pallas kernel
# ---------------------------------------------------------------------------

def _cam_embed_kernel(x_ref, y_ref, b_ref, o_ref):
    # x_ref, y_ref: [tile_hw, 1]   per-pixel image-plane coordinates
    # b_ref:        [kpg, 3, D]    fused per-camera rows (A0, A1, bias)
    # o_ref:        [kpg, tile_hw, D]  normalized embedding, lane-dense in D
    x = x_ref[...]                                   # [tile_hw, 1]
    y = y_ref[...]
    kpg = o_ref.shape[0]
    for c in range(kpg):                             # tiny static unroll over cameras
        rows = b_ref[c]                              # [3, D]
        a0 = rows[0:1, :]                            # [1, D]
        a1 = rows[1:2, :]
        bias = rows[2:3, :]
        # VPU broadcast multiply-adds (depth-4 contraction not worth the MXU).
        z = x * a0 + y * a1 + bias                   # [tile_hw, D]
        norm = jnp.sqrt(jnp.sum(z * z, axis=-1, keepdims=True))   # [tile_hw, 1]
        inv = pl.reciprocal(norm + 1e-7, approx=False)             # narrow column
        o_ref[c] = (z * inv).astype(o_ref.dtype)


def camera_aware_embedding_forward(I_inv, E_inv, w_img, w_cam,
                                   img_h, img_w, feat_h, feat_w,
                                   *, tile_hw=None, out_dtype=jnp.float32):
    """I_inv: [b,n,3,3], E_inv: [b,n,4,4], w_img/w_cam: [D,4] (1x1 conv weights).

    Returns the camera-aware embedding in channels-last layout
    [b*n, feat_h, feat_w, D] (PyTorch returns the NCHW permutation of this).
    """
    b, n = I_inv.shape[:2]
    K = b * n
    D = w_img.shape[0]
    HW = feat_h * feat_w

    x_np, y_np = build_pixel_xy(img_h, img_w, feat_h, feat_w)       # [HW,1] each
    X = jnp.asarray(x_np)
    Y = jnp.asarray(y_np)
    B = fuse_camera_matrices(I_inv.reshape(K, 3, 3),
                             E_inv.reshape(K, 4, 4), w_img, w_cam)  # [K,3,D]

    # >=2 parallel grid steps when the camera count allows it (v7x megacore);
    # otherwise collapse to a single step.
    G = 2 if (K % 2 == 0 and K >= 2) else 1
    kpg = K // G

    if tile_hw is None:
        tile_hw = _choose_tile(HW)
    assert HW % tile_hw == 0 and (tile_hw % 8 == 0 or tile_hw == HW)
    n_tiles = HW // tile_hw

    grid_spec = pltpu.PrefetchScalarGridSpec(
        num_scalar_prefetch=0,
        grid=(G, n_tiles),
        in_specs=[
            pl.BlockSpec((tile_hw, 1), lambda g, j: (j, 0)),    # pixel x column
            pl.BlockSpec((tile_hw, 1), lambda g, j: (j, 0)),    # pixel y column
            pl.BlockSpec((kpg, 3, D), lambda g, j: (g, 0, 0)),  # fused camera rows
        ],
        out_specs=pl.BlockSpec((kpg, tile_hw, D), lambda g, j: (g, j, 0)),
    )

    out_itemsize = np.dtype(out_dtype).itemsize
    cost = pl.CostEstimate(
        flops=7 * K * HW * D,                 # 2 FMA + square-acc + normalize mul
        transcendentals=2 * K * HW,           # sqrt + reciprocal per pixel
        bytes_accessed=(G * HW * 2 * 4        # x,y columns re-fetched per camera group
                        + K * 3 * D * 4
                        + K * HW * D * out_itemsize),
    )

    out = pl.pallas_call(
        _cam_embed_kernel,
        out_shape=jax.ShapeDtypeStruct((K, HW, D), out_dtype),
        grid_spec=grid_spec,
        compiler_params=pltpu.CompilerParams(
            dimension_semantics=("parallel", "parallel")),
        cost_estimate=cost,
    )(X, Y, B)
    return out.reshape(K, feat_h, feat_w, D)


# ---------------------------------------------------------------------------
# pure-JAX reference (mirrors the PyTorch forward step by step, NCHW output)
# ---------------------------------------------------------------------------

def ref_forward(I_inv, E_inv, w_img, w_cam, img_h, img_w, feat_h, feat_w):
    b, n = I_inv.shape[:2]
    K = b * n
    scale = img_h // feat_h
    coords_h = jnp.asarray(np.linspace(scale // 2, img_h - scale // 2, feat_h),
                           jnp.float32)
    coords_w = jnp.asarray(np.linspace(scale // 2, img_w - scale // 2, feat_w),
                           jnp.float32)
    xx = jnp.broadcast_to(coords_w[None, :], (feat_h, feat_w))
    yy = jnp.broadcast_to(coords_h[:, None], (feat_h, feat_w))
    image_plane = jnp.stack([xx, yy, jnp.ones_like(xx)], axis=0)         # [3,h,w]

    c = E_inv[..., -1]                                                   # [b,n,4]
    c_embed = jnp.einsum('dc,bnc->bnd', w_cam, c).reshape(K, -1)[:, :, None, None]
    pixel_flat = image_plane.reshape(3, feat_h * feat_w)
    cam = jnp.einsum('bnij,jp->bnip', I_inv, pixel_flat)                 # [b,n,3,HW]
    cam = jnp.concatenate([cam, jnp.ones_like(cam[:, :, :1])], axis=2)   # pad row of 1s
    d = jnp.einsum('bnij,bnjp->bnip', E_inv, cam)                        # [b,n,4,HW]
    d_flat = d.reshape(K, 4, feat_h, feat_w)
    d_embed = jnp.einsum('dc,kchw->kdhw', w_img, d_flat)
    img_embed = d_embed - c_embed
    norm = jnp.linalg.norm(img_embed, axis=1, keepdims=True)
    return img_embed / (norm + 1e-7)


if __name__ == "__main__":
    b, n = 2, 3                       # batch, cameras  -> K = 6
    img_h = img_w = 256
    feat_h = feat_w = 16              # HW = 256
    embed_dims = 128                  # lane-dense embedding width

    key = jax.random.PRNGKey(0)
    k1, k2, k3, k4 = jax.random.split(key, 4)
    # stand-ins for inverse intrinsics / extrinsics (any invertible values work)
    I_inv = jax.random.normal(k1, (b, n, 3, 3), jnp.float32) / float(max(img_h, img_w))
    E_inv = jax.random.normal(k2, (b, n, 4, 4), jnp.float32)
    # Conv2d(4, D, 1, bias=False) weights, reshaped from (D,4,1,1) to (D,4)
    w_img = jax.random.normal(k3, (embed_dims, 4), jnp.float32) * 0.1
    w_cam = jax.random.normal(k4, (embed_dims, 4), jnp.float32) * 0.1

    out_nhwc = camera_aware_embedding_forward(I_inv, E_inv, w_img, w_cam,
                                              img_h, img_w, feat_h, feat_w)
    out_nhwc = jax.block_until_ready(out_nhwc)

    ref_nchw = ref_forward(I_inv, E_inv, w_img, w_cam, img_h, img_w, feat_h, feat_w)
    out_nchw = jnp.transpose(out_nhwc, (0, 3, 1, 2))
    assert out_nchw.shape == (b * n, embed_dims, feat_h, feat_w)
    np.testing.assert_allclose(np.asarray(out_nchw), np.asarray(ref_nchw),
                               rtol=1e-4, atol=1e-4)
    print("KERNEL_OK")
</pallas_src>

<mosaic_0001>
module attributes {stable_mosaic.version = 11 : i64} {
  func.func @_cam_embed_kernel(%arg0: i32, %arg1: i32, %arg2: memref<256x1xf32, #tpu.memory_space<vmem>>, %arg3: memref<256x1xf32, #tpu.memory_space<vmem>>, %arg4: memref<3x3x128xf32, #tpu.memory_space<vmem>>, %arg5: memref<3x256x128xf32, #tpu.memory_space<vmem>>) attributes {dimension_semantics = [#tpu.dimension_semantics<parallel>, #tpu.dimension_semantics<parallel>], iteration_bounds = array<i64: 2, 1>, scalar_prefetch = 0 : i64, scratch_operands = 0 : i64, tpu.core_type = #tpu.core_type<tc>, window_params = [{transform_indices = @transform_0, window_bounds = array<i64: 256, 1>}, {transform_indices = @transform_1, window_bounds = array<i64: 256, 1>}, {transform_indices = @transform_2, window_bounds = array<i64: 3, 3, 128>}, {transform_indices = @transform_3, window_bounds = array<i64: 3, 256, 128>}]} {
    %c0 = arith.constant 0 : index
    %c0_0 = arith.constant 0 : index
    %0 = vector.load %arg2[%c0, %c0_0] : memref<256x1xf32, #tpu.memory_space<vmem>>, vector<256x1xf32>
    %c0_1 = arith.constant 0 : index
    %c0_2 = arith.constant 0 : index
    %1 = vector.load %arg3[%c0_1, %c0_2] : memref<256x1xf32, #tpu.memory_space<vmem>>, vector<256x1xf32>
    %c0_3 = arith.constant 0 : index
    %c0_4 = arith.constant 0 : index
    %c0_5 = arith.constant 0 : index
    %2 = vector.load %arg4[%c0_3, %c0_4, %c0_5] : memref<3x3x128xf32, #tpu.memory_space<vmem>>, vector<1x3x128xf32>
    %3 = vector.shape_cast %2 : vector<1x3x128xf32> to vector<3x128xf32>
    %4 = vector.extract_strided_slice %3 {offsets = [0, 0], sizes = [1, 128], strides = [1, 1]} : vector<3x128xf32> to vector<1x128xf32>
    %5 = vector.extract_strided_slice %3 {offsets = [1, 0], sizes = [1, 128], strides = [1, 1]} : vector<3x128xf32> to vector<1x128xf32>
    %6 = vector.extract_strided_slice %3 {offsets = [2, 0], sizes = [1, 128], strides = [1, 1]} : vector<3x128xf32> to vector<1x128xf32>
    %7 = vector.broadcast %0 : vector<256x1xf32> to vector<256x128xf32>
    %8 = vector.broadcast %4 : vector<1x128xf32> to vector<256x128xf32>
    %9 = arith.mulf %7, %8 : vector<256x128xf32>
    %10 = vector.broadcast %1 : vector<256x1xf32> to vector<256x128xf32>
    %11 = vector.broadcast %5 : vector<1x128xf32> to vector<256x128xf32>
    %12 = arith.mulf %10, %11 : vector<256x128xf32>
    %13 = arith.addf %9, %12 : vector<256x128xf32>
    %14 = vector.broadcast %6 : vector<1x128xf32> to vector<256x128xf32>
    %15 = arith.addf %13, %14 : vector<256x128xf32>
    %16 = arith.mulf %15, %15 : vector<256x128xf32>
    %cst = arith.constant dense<0.000000e+00> : vector<256xf32>
    %17 = vector.multi_reduction <add>, %16, %cst [1] : vector<256x128xf32> to vector<256xf32>
    %18 = vector.shape_cast %17 : vector<256xf32> to vector<256x1xf32>
    %19 = math.sqrt %18 : vector<256x1xf32>
    %cst_6 = arith.constant 1.000000e-07 : f32
    %20 = vector.broadcast %cst_6 : f32 to vector<256x1xf32>
    %21 = arith.addf %19, %20 : vector<256x1xf32>
    %22 = tpu.reciprocal %21 : vector<256x1xf32> -> vector<256x1xf32>
    %23 = vector.broadcast %22 : vector<256x1xf32> to vector<256x128xf32>
    %24 = arith.mulf %15, %23 : vector<256x128xf32>
    %c0_7 = arith.constant 0 : index
    %c0_8 = arith.constant 0 : index
    %c0_9 = arith.constant 0 : index
    %25 = vector.load %arg5[%c0_7, %c0_8, %c0_9] : memref<3x256x128xf32, #tpu.memory_space<vmem>>, vector<1x256x128xf32>
    %26 = vector.shape_cast %25 : vector<1x256x128xf32> to vector<256x128xf32>
    %27 = vector.shape_cast %24 : vector<256x128xf32> to vector<1x256x128xf32>
    tpu.vector_store %arg5[%c0_7, %c0_8, %c0_9], %27 {strides = array<i32>} : memref<3x256x128xf32, #tpu.memory_space<vmem>>, vector<1x256x128xf32>,
    %c1 = arith.constant 1 : index
    %c0_10 = arith.constant 0 : index
    %c0_11 = arith.constant 0 : index
    %28 = vector.load %arg4[%c1, %c0_10, %c0_11] : memref<3x3x128xf32, #tpu.memory_space<vmem>>, vector<1x3x128xf32>
    %29 = vector.shape_cast %28 : vector<1x3x128xf32> to vector<3x128xf32>
    %30 = vector.extract_strided_slice %29 {offsets = [0, 0], sizes = [1, 128], strides = [1, 1]} : vector<3x128xf32> to vector<1x128xf32>
    %31 = vector.extract_strided_slice %29 {offsets = [1, 0], sizes = [1, 128], strides = [1, 1]} : vector<3x128xf32> to vector<1x128xf32>
    %32 = vector.extract_strided_slice %29 {offsets = [2, 0], sizes = [1, 128], strides = [1, 1]} : vector<3x128xf32> to vector<1x128xf32>
    %33 = vector.broadcast %0 : vector<256x1xf32> to vector<256x128xf32>
    %34 = vector.broadcast %30 : vector<1x128xf32> to vector<256x128xf32>
    %35 = arith.mulf %33, %34 : vector<256x128xf32>
    %36 = vector.broadcast %1 : vector<256x1xf32> to vector<256x128xf32>
    %37 = vector.broadcast %31 : vector<1x128xf32> to vector<256x128xf32>
    %38 = arith.mulf %36, %37 : vector<256x128xf32>
    %39 = arith.addf %35, %38 : vector<256x128xf32>
    %40 = vector.broadcast %32 : vector<1x128xf32> to vector<256x128xf32>
    %41 = arith.addf %39, %40 : vector<256x128xf32>
    %42 = arith.mulf %41, %41 : vector<256x128xf32>
    %cst_12 = arith.constant dense<0.000000e+00> : vector<256xf32>
    %43 = vector.multi_reduction <add>, %42, %cst_12 [1] : vector<256x128xf32> to vector<256xf32>
    %44 = vector.shape_cast %43 : vector<256xf32> to vector<256x1xf32>
    %45 = math.sqrt %44 : vector<256x1xf32>
    %cst_13 = arith.constant 1.000000e-07 : f32
    %46 = vector.broadcast %cst_13 : f32 to vector<256x1xf32>
    %47 = arith.addf %45, %46 : vector<256x1xf32>
    %48 = tpu.reciprocal %47 : vector<256x1xf32> -> vector<256x1xf32>
    %49 = vector.broadcast %48 : vector<256x1xf32> to vector<256x128xf32>
    %50 = arith.mulf %41, %49 : vector<256x128xf32>
    %c1_14 = arith.constant 1 : index
    %c0_15 = arith.constant 0 : index
    %c0_16 = arith.constant 0 : index
    %51 = vector.load %arg5[%c1_14, %c0_15, %c0_16] : memref<3x256x128xf32, #tpu.memory_space<vmem>>, vector<1x256x128xf32>
    %52 = vector.shape_cast %51 : vector<1x256x128xf32> to vector<256x128xf32>
    %53 = vector.shape_cast %50 : vector<256x128xf32> to vector<1x256x128xf32>
    tpu.vector_store %arg5[%c1_14, %c0_15, %c0_16], %53 {strides = array<i32>} : memref<3x256x128xf32, #tpu.memory_space<vmem>>, vector<1x256x128xf32>,
    %c2 = arith.constant 2 : index
    %c0_17 = arith.constant 0 : index
    %c0_18 = arith.constant 0 : index
    %54 = vector.load %arg4[%c2, %c0_17, %c0_18] : memref<3x3x128xf32, #tpu.memory_space<vmem>>, vector<1x3x128xf32>
    %55 = vector.shape_cast %54 : vector<1x3x128xf32> to vector<3x128xf32>
    %56 = vector.extract_strided_slice %55 {offsets = [0, 0], sizes = [1, 128], strides = [1, 1]} : vector<3x128xf32> to vector<1x128xf32>
    %57 = vector.extract_strided_slice %55 {offsets = [1, 0], sizes = [1, 128], strides = [1, 1]} : vector<3x128xf32> to vector<1x128xf32>
    %58 = vector.extract_strided_slice %55 {offsets = [2, 0], sizes = [1, 128], strides = [1, 1]} : vector<3x128xf32> to vector<1x128xf32>
    %59 = vector.broadcast %0 : vector<256x1xf32> to vector<256x128xf32>
    %60 = vector.broadcast %56 : vector<1x128xf32> to vector<256x128xf32>
    %61 = arith.mulf %59, %60 : vector<256x128xf32>
    %62 = vector.broadcast %1 : vector<256x1xf32> to vector<256x128xf32>
    %63 = vector.broadcast %57 : vector<1x128xf32> to vector<256x128xf32>
    %64 = arith.mulf %62, %63 : vector<256x128xf32>
    %65 = arith.addf %61, %64 : vector<256x128xf32>
    %66 = vector.broadcast %58 : vector<1x128xf32> to vector<256x128xf32>
    %67 = arith.addf %65, %66 : vector<256x128xf32>
    %68 = arith.mulf %67, %67 : vector<256x128xf32>
    %cst_19 = arith.constant dense<0.000000e+00> : vector<256xf32>
    %69 = vector.multi_reduction <add>, %68, %cst_19 [1] : vector<256x128xf32> to vector<256xf32>
    %70 = vector.shape_cast %69 : vector<256xf32> to vector<256x1xf32>
    %71 = math.sqrt %70 : vector<256x1xf32>
    %cst_20 = arith.constant 1.000000e-07 : f32
    %72 = vector.broadcast %cst_20 : f32 to vector<256x1xf32>
    %73 = arith.addf %71, %72 : vector<256x1xf32>
    %74 = tpu.reciprocal %73 : vector<256x1xf32> -> vector<256x1xf32>
    %75 = vector.broadcast %74 : vector<256x1xf32> to vector<256x128xf32>
    %76 = arith.mulf %67, %75 : vector<256x128xf32>
    %c2_21 = arith.constant 2 : index
    %c0_22 = arith.constant 0 : index
    %c0_23 = arith.constant 0 : index
    %77 = vector.load %arg5[%c2_21, %c0_22, %c0_23] : memref<3x256x128xf32, #tpu.memory_space<vmem>>, vector<1x256x128xf32>
    %78 = vector.shape_cast %77 : vector<1x256x128xf32> to vector<256x128xf32>
    %79 = vector.shape_cast %76 : vector<256x128xf32> to vector<1x256x128xf32>
    tpu.vector_store %arg5[%c2_21, %c0_22, %c0_23], %79 {strides = array<i32>} : memref<3x256x128xf32, #tpu.memory_space<vmem>>, vector<1x256x128xf32>,
    return
  }
  func.func @transform_0(%arg0: i32, %arg1: i32) -> (i32, i32) {
    %c0_i32 = arith.constant 0 : i32
    %c0_i32_0 = arith.constant 0 : i32
    return %arg1, %c0_i32 : i32, i32
  }
  func.func @transform_1(%arg0: i32, %arg1: i32) -> (i32, i32) {
    %c0_i32 = arith.constant 0 : i32
    %c0_i32_0 = arith.constant 0 : i32
    return %arg1, %c0_i32 : i32, i32
  }
  func.func @transform_2(%arg0: i32, %arg1: i32) -> (i32, i32, i32) {
    %c0_i32 = arith.constant 0 : i32
    %c0_i32_0 = arith.constant 0 : i32
    %c0_i32_1 = arith.constant 0 : i32
    return %arg0, %c0_i32, %c0_i32_0 : i32, i32, i32
  }
  func.func @transform_3(%arg0: i32, %arg1: i32) -> (i32, i32, i32) {
    %c0_i32 = arith.constant 0 : i32
    %c0_i32_0 = arith.constant 0 : i32
    return %arg0, %arg1, %c0_i32 : i32, i32, i32
  }
}

</mosaic_0001>

<llo_original>
// kernel: tpu_custom_call.1
$region0: #{tpu_custom_call.1}
  #allocation0 [shape = 'u32[]', space=smem, size = 0x4, offset = 0x4, fixed_abs, tag = 'smem constant byte address 0x4 - core index']
  #allocation1 [shape = 'u32[144,128]{1,0:T(1,128)}', space=vmem, size = 0x12000, scoped, tag = 'internal scratch']
  %s0 = inlined_call_operand.vmem [shape: f32[256,1], index: 0, kind: input, shape index: {}]
  %s1 = inlined_call_operand.vmem [shape: f32[256,1], index: 1, kind: input, shape index: {}]
  %s2 = inlined_call_operand.vmem [shape: f32[6,3,128], index: 2, kind: input, shape index: {}]
  %s3 = inlined_call_operand.hbm [shape: f32[6,256,128], index: 3, kind: output, shape index: {}]
  %s4 = sld [smem:[#allocation0]]
  $region45: #{tpu_custom_call.1} parent=0
    _
  %s6 = ssub.s32 1, %s4
  %s7 = scalar_select 0, %s6, %s4
  $region1: #{tpu_custom_call.1} parent=0
    #allocation2 [shape = 'u8[786432]{0}', space=vmem, size = 0xc0000, scoped, tag = 'output window, operand 0']
    #allocation3 [shape = 's32[2]{0}', space=sflag, size = 0x8, scoped, tag = 'scoped memory for tpu_custom_call.1']
    %8 = vsyncpa [#allocation3], 0
    %s9 = scalar_lea.sflag [#allocation3], 1
    %10 = vsyncpa %s9, 0
    loop: start=0, step=1, limit=4
    $region2: #{tpu_custom_call.1} parent=1 // loop_pre_header
      _
    $region3: #{tpu_custom_call.1} parent=1 // loop_header
      %s12 = sphi 0, %s16
      %p13 = scmp.ge.s32.totalorder %s12, 4
      %s19 = sphi 0, %s31
      %s20 = sphi 0, %s27
      %s21 = sphi 0, %s19
      %s22 = sphi 0, %s20
      %s23 = sphi 0, %s21
      %s24 = sphi 0, %s22
      %s34 = sphi 0, %s36
      %s37 = sphi 0, %s34
      %s38 = sphi 0, %s37
      %s54 = sphi 0, %s38
      %s60 = sphi 0, %s62
      %s63 = sphi 0, %s60
      %s64 = sphi 0, %s63
      %s80 = sphi 0, %s64
      %s86 = sphi 0, %s88
      %s89 = sphi 0, %s86
      %s90 = sphi 0, %s89
      %s106 = sphi 0, %s90
      %s114 = sphi 0, %s116
      %s117 = sphi 0, %s114
      %s118 = sphi 0, %s117
      %s134 = sphi 0, %s118
    $region4: #{tpu_custom_call.1} parent=1 // loop_header_branch
      %15 = sbr.rel (%p13) target = $region8
    $region5: #{tpu_custom_call.1} parent=1 // loop_body
      %s17 = ssub.s32 %s12, 1
      %s18 = ssub.s32 %s12, 2
      %s25 = sadd.s32 1, %s20
      %p26 = scmp.ge.s32.totalorder %s25, 1
      %s27 = scalar_select %p26, 0, %s25
      %s28 = sadd.s32 1, %s19
      %s29 = scalar_select %p26, %s28, %s19
      %p30 = scmp.ge.s32.totalorder %s29, 2
      %s31 = scalar_select %p30, 0, %s29
      %s32 = ssub.s32 %s20, %s27
      %p33 = scmp.eq.s32.totalorder %s32, 0
      %s35 = sadd.s32 %s34, 1
      %s36 = scalar_select %p33, %s34, %s35
      %p39 = pneg %p33
      %p40 = scmp.eq.s32.totalorder %s12, 1
      %p41 = por %p39, %p40
      %p42 = scmp.ne.s32.totalorder %s34, %s37
      %p43 = scmp.eq.s32.totalorder %s12, 0
      %p44 = por %p42, %p43
      %p45 = scmp.ne.s32.totalorder %s34, %s37
      %p46 = scmp.eq.s32.totalorder %s17, 1
      %p47 = por %p45, %p46
      %p48 = scmp.ne.s32.totalorder %s37, %s38
      %p49 = scmp.eq.s32.totalorder %s17, 0
      %p50 = por %p48, %p49
      %p51 = scmp.ne.s32.totalorder %s37, %s38
      %p52 = scmp.eq.s32.totalorder %s18, 1
      %p53 = por %p51, %p52
      %p55 = scmp.ne.s32.totalorder %s38, %s54
      %p56 = scmp.eq.s32.totalorder %s18, 0
      %p57 = por %p55, %p56
      %s58 = ssub.s32 %s20, %s27
      %p59 = scmp.eq.s32.totalorder %s58, 0
      %s61 = sadd.s32 %s60, 1
      %s62 = scalar_select %p59, %s60, %s61
      %p65 = pneg %p59
      %p66 = scmp.eq.s32.totalorder %s12, 1
      %p67 = por %p65, %p66
      %p68 = scmp.ne.s32.totalorder %s60, %s63
      %p69 = scmp.eq.s32.totalorder %s12, 0
      %p70 = por %p68, %p69
      %p71 = scmp.ne.s32.totalorder %s60, %s63
      %p72 = scmp.eq.s32.totalorder %s17, 1
      %p73 = por %p71, %p72
      %p74 = scmp.ne.s32.totalorder %s63, %s64
      %p75 = scmp.eq.s32.totalorder %s17, 0
      %p76 = por %p74, %p75
      %p77 = scmp.ne.s32.totalorder %s63, %s64
      %p78 = scmp.eq.s32.totalorder %s18, 1
      %p79 = por %p77, %p78
      %p81 = scmp.ne.s32.totalorder %s64, %s80
      %p82 = scmp.eq.s32.totalorder %s18, 0
      %p83 = por %p81, %p82
      %s84 = ssub.s32 %s19, %s31
      %p85 = scmp.eq.s32.totalorder %s84, 0
      %s87 = sadd.s32 %s86, 1
      %s88 = scalar_select %p85, %s86, %s87
      %p91 = pneg %p85
      %p92 = scmp.eq.s32.totalorder %s12, 1
      %p93 = por %p91, %p92
      %p94 = scmp.ne.s32.totalorder %s86, %s89
      %p95 = scmp.eq.s32.totalorder %s12, 0
      %p96 = por %p94, %p95
      %p97 = scmp.ne.s32.totalorder %s86, %s89
      %p98 = scmp.eq.s32.totalorder %s17, 1
      %p99 = por %p97, %p98
      %p100 = scmp.ne.s32.totalorder %s89, %s90
      %p101 = scmp.eq.s32.totalorder %s17, 0
      %p102 = por %p100, %p101
      %p103 = scmp.ne.s32.totalorder %s89, %s90
      %p104 = scmp.eq.s32.totalorder %s18, 1
      %p105 = por %p103, %p104
      %p107 = scmp.ne.s32.totalorder %s90, %s106
      %p108 = scmp.eq.s32.totalorder %s18, 0
      %p109 = por %p107, %p108
      %s110 = ssub.s32 %s19, %s31
      %s111 = ssub.s32 %s20, %s27
      %s112 = sor.u32 %s110, %s111
      %p113 = scmp.eq.s32.totalorder %s112, 0
      %s115 = sadd.s32 %s114, 1
      %s116 = scalar_select %p113, %s114, %s115
      %p119 = pneg %p113
      %p120 = scmp.eq.s32.totalorder %s12, 1
      %p121 = por %p119, %p120
      %p122 = scmp.ne.s32.totalorder %s114, %s117
      %p123 = scmp.eq.s32.totalorder %s12, 0
      %p124 = por %p122, %p123
      %p125 = scmp.ne.s32.totalorder %s114, %s117
      %p126 = scmp.eq.s32.totalorder %s17, 1
      %p127 = por %p125, %p126
      %p128 = scmp.ne.s32.totalorder %s117, %s118
      %p129 = scmp.eq.s32.totalorder %s17, 0
      %p130 = por %p128, %p129
      %p131 = scmp.ne.s32.totalorder %s117, %s118
      %p132 = scmp.eq.s32.totalorder %s18, 1
      %p133 = por %p131, %p132
      %p135 = scmp.ne.s32.totalorder %s118, %s134
      %p136 = scmp.eq.s32.totalorder %s18, 0
      %p137 = por %p135, %p136
      %p138 = scmp.le.s32.totalorder 1, %s12
      %p139 = scmp.lt.s32.totalorder %s12, 3
      %p140 = pnand %p138, %p139
      %p141 = pneg %p140
      // Predicated region
      $region9: #{tpu_custom_call.1} parent=5 // pred_check
        _
      $region10: #{tpu_custom_call.1} parent=5 // pred_check_branch
        %143 = sbr.rel (%p140) target = $region12
      $region11: #{tpu_custom_call.1} parent=5 // pred_region
        %s144 = ssub.s32 %s12, 1
        // Predicated region
        $region13: #{tpu_custom_call.1} parent=11 // pred_check
          %p145 = pneg %p50
        $region14: #{tpu_custom_call.1} parent=11 // pred_check_branch
          %147 = sbr.rel (%p145) target = $region16
        $region15: #{tpu_custom_call.1} parent=11 // pred_region
          %s148 = smul.u32 32, %s22
          %p149 = scmp.lt.s32.totalorder %s148, 31
          %s150 = scalar_select %p149, %s148, 31
          %s151 = smul.addr %s150, 8
          %s152 = scalar_lea.vmem %s0, %s151
          %s153 = smul.u32 32, %s22
        $region16: #{tpu_custom_call.1} parent=11 // pred_fallthru
          _
        // Predicated region
        $region17: #{tpu_custom_call.1} parent=11 // pred_check
          %p154 = pneg %p76
        $region18: #{tpu_custom_call.1} parent=11 // pred_check_branch
          %156 = sbr.rel (%p154) target = $region20
        $region19: #{tpu_custom_call.1} parent=11 // pred_region
          %s157 = smul.u32 32, %s22
          %p158 = scmp.lt.s32.totalorder %s157, 31
          %s159 = scalar_select %p158, %s157, 31
          %s160 = smul.addr %s159, 8
          %s161 = scalar_lea.vmem %s1, %s160
          %s162 = smul.u32 32, %s22
        $region20: #{tpu_custom_call.1} parent=11 // pred_fallthru
          _
      $region12: #{tpu_custom_call.1} parent=5 // pred_fallthru
        _
      %p163 = scmp.lt.s32.totalorder %s12, 2
      // Predicated region
      $region21: #{tpu_custom_call.1} parent=5 // pred_check
        %p164 = pneg %p163
      $region22: #{tpu_custom_call.1} parent=5 // pred_check_branch
        %166 = sbr.rel (%p164) target = $region24
      $region23: #{tpu_custom_call.1} parent=5 // pred_region
        // Predicated region
        $region25: #{tpu_custom_call.1} parent=23 // pred_check
          %p167 = pneg %p96
        $region26: #{tpu_custom_call.1} parent=23 // pred_check_branch
          %169 = sbr.rel (%p167) target = $region28
        $region27: #{tpu_custom_call.1} parent=23 // pred_region
          %s170 = smul.u32 3, %s19
          %p171 = scmp.lt.s32.totalorder %s170, 5
          %s172 = scalar_select %p171, %s170, 5
          %s173 = smul.addr %s172, 4
          %s174 = scalar_lea.vmem %s2, %s173
          %s175 = smul.u32 3, %s19
        $region28: #{tpu_custom_call.1} parent=23 // pred_fallthru
          _
      $region24: #{tpu_custom_call.1} parent=5 // pred_fallthru
        _
      %p176 = scmp.le.s32.totalorder 1, %s12
      %p177 = scmp.lt.s32.totalorder %s12, 3
      %p178 = pnand %p176, %p177
      %p179 = pneg %p178
      // Predicated region
      $region29: #{tpu_custom_call.1} parent=5 // pred_check
        _
      $region30: #{tpu_custom_call.1} parent=5 // pred_check_branch
        %181 = sbr.rel (%p178) target = $region32
      $region31: #{tpu_custom_call.1} parent=5 // pred_region
        %s182 = ssub.s32 %s12, 1
        %s183 = smul.u32 32, %s22
        %p184 = scmp.lt.s32.totalorder %s183, 31
        %s185 = scalar_select %p184, %s183, 31
        %s186 = smul.addr %s185, 8
        %s187 = scalar_lea.vmem %s0, %s186
        %p188 = pneg %p50
        %p189 = pneg %p47
        %s190 = smul.u32 32, %s22
        %p191 = scmp.lt.s32.totalorder %s190, 31
        %s192 = scalar_select %p191, %s190, 31
        %s193 = smul.addr %s192, 8
        %s194 = scalar_lea.vmem %s1, %s193
        %p195 = pneg %p76
        %p196 = pneg %p73
        %s197 = smul.u32 3, %s21
        %p198 = scmp.lt.s32.totalorder %s197, 5
        %s199 = scalar_select %p198, %s197, 5
        %s200 = smul.addr %s199, 4
        %s201 = scalar_lea.vmem %s2, %s200
        %p202 = pneg %p102
        %p203 = pneg %p99
        %p204 = pneg %p130
        %p205 = pneg %p127
        %s206 = sand.u32 %s117, 1
        %s207 = scalar_lea.sflag [#allocation3], %s206
        %s208 = sand.u32 %s117, 1
        %s209 = smul.addr %s208, 768
        %s210 = scalar_lea.vmem [#allocation2], %s209
        %s211 = smul.u32 32, %s22
        %p212 = scmp.lt.s32.totalorder %s211, 31
        %s213 = scalar_select %p212, %s211, 31
        %s214 = smul.addr %s213, 8
        %s215 = scalar_lea.vmem %s0, %s214
        %s216 = smul.u32 32, %s22
        %s217 = smul.u32 32, %s22
        %p218 = scmp.lt.s32.totalorder %s217, 31
        %s219 = scalar_select %p218, %s217, 31
        %s220 = smul.addr %s219, 8
        %s221 = scalar_lea.vmem %s1, %s220
        %s222 = smul.u32 32, %s22
        %s223 = smul.u32 3, %s21
        %p224 = scmp.lt.s32.totalorder %s223, 5
        %s225 = scalar_select %p224, %s223, 5
        %s226 = smul.addr %s225, 4
        %s227 = scalar_lea.vmem %s2, %s226
        %s228 = smul.u32 3, %s21
        %s229 = smul.u32 3, %s21
        %s230 = smul.u32 32, %s22
        %v231 = vld [vmem:[%s215] sm:$0xff]
        %v232 = vld [vmem:[%s215 + $0x8] sm:$0xff]
        %v233 = vld [vmem:[%s215 + $0x10] sm:$0xff]
        %v234 = vld [vmem:[%s215 + $0x18] sm:$0xff]
        %v235 = vld [vmem:[%s215 + $0x20] sm:$0xff]
        %v236 = vld [vmem:[%s215 + $0x28] sm:$0xff]
        %v237 = vld [vmem:[%s215 + $0x30] sm:$0xff]
        %v238 = vld [vmem:[%s215 + $0x38] sm:$0xff]
        %v239 = vld [vmem:[%s215 + $0x40] sm:$0xff]
        %v240 = vld [vmem:[%s215 + $0x48] sm:$0xff]
        %v241 = vld [vmem:[%s215 + $0x50] sm:$0xff]
        %v242 = vld [vmem:[%s215 + $0x58] sm:$0xff]
        %v243 = vld [vmem:[%s215 + $0x60] sm:$0xff]
        %v244 = vld [vmem:[%s215 + $0x68] sm:$0xff]
        %v245 = vld [vmem:[%s215 + $0x70] sm:$0xff]
        %v246 = vld [vmem:[%s215 + $0x78] sm:$0xff]
        %v247 = vld [vmem:[%s215 + $0x80] sm:$0xff]
        %v248 = vld [vmem:[%s215 + $0x88] sm:$0xff]
        %v249 = vld [vmem:[%s215 + $0x90] sm:$0xff]
        %v250 = vld [vmem:[%s215 + $0x98] sm:$0xff]
        %v251 = vld [vmem:[%s215 + $0xa0] sm:$0xff]
        %v252 = vld [vmem:[%s215 + $0xa8] sm:$0xff]
        %v253 = vld [vmem:[%s215 + $0xb0] sm:$0xff]
        %v254 = vld [vmem:[%s215 + $0xb8] sm:$0xff]
        %v255 = vld [vmem:[%s215 + $0xc0] sm:$0xff]
        %v256 = vld [vmem:[%s215 + $0xc8] sm:$0xff]
        %v257 = vld [vmem:[%s215 + $0xd0] sm:$0xff]
        %v258 = vld [vmem:[%s215 + $0xd8] sm:$0xff]
        %v259 = vld [vmem:[%s215 + $0xe0] sm:$0xff]
        %v260 = vld [vmem:[%s215 + $0xe8] sm:$0xff]
        %v261 = vld [vmem:[%s215 + $0xf0] sm:$0xff]
        %v262 = vld [vmem:[%s215 + $0xf8] sm:$0xff]
        %v263 = vld [vmem:[%s221] sm:$0xff]
        %v264 = vld [vmem:[%s221 + $0x8] sm:$0xff]
        %v265 = vld [vmem:[%s221 + $0x10] sm:$0xff]
        %v266 = vld [vmem:[%s221 + $0x18] sm:$0xff]
        %v267 = vld [vmem:[%s221 + $0x20] sm:$0xff]
        %v268 = vld [vmem:[%s221 + $0x28] sm:$0xff]
        %v269 = vld [vmem:[%s221 + $0x30] sm:$0xff]
        %v270 = vld [vmem:[%s221 + $0x38] sm:$0xff]
        %v271 = vld [vmem:[%s221 + $0x40] sm:$0xff]
        %v272 = vld [vmem:[%s221 + $0x48] sm:$0xff]
        %v273 = vld [vmem:[%s221 + $0x50] sm:$0xff]
        %v274 = vld [vmem:[%s221 + $0x58] sm:$0xff]
        %v275 = vld [vmem:[%s221 + $0x60] sm:$0xff]
        %v276 = vld [vmem:[%s221 + $0x68] sm:$0xff]
        %v277 = vld [vmem:[%s221 + $0x70] sm:$0xff]
        %v278 = vld [vmem:[%s221 + $0x78] sm:$0xff]
        %v279 = vld [vmem:[%s221 + $0x80] sm:$0xff]
        %v280 = vld [vmem:[%s221 + $0x88] sm:$0xff]
        %v281 = vld [vmem:[%s221 + $0x90] sm:$0xff]
        %v282 = vld [vmem:[%s221 + $0x98] sm:$0xff]
        %v283 = vld [vmem:[%s221 + $0xa0] sm:$0xff]
        %v284 = vld [vmem:[%s221 + $0xa8] sm:$0xff]
        %v285 = vld [vmem:[%s221 + $0xb0] sm:$0xff]
        %v286 = vld [vmem:[%s221 + $0xb8] sm:$0xff]
        %v287 = vld [vmem:[%s221 + $0xc0] sm:$0xff]
        %v288 = vld [vmem:[%s221 + $0xc8] sm:$0xff]
        %v289 = vld [vmem:[%s221 + $0xd0] sm:$0xff]
        %v290 = vld [vmem:[%s221 + $0xd8] sm:$0xff]
        %v291 = vld [vmem:[%s221 + $0xe0] sm:$0xff]
        %v292 = vld [vmem:[%s221 + $0xe8] sm:$0xff]
        %v293 = vld [vmem:[%s221 + $0xf0] sm:$0xff]
        %v294 = vld [vmem:[%s221 + $0xf8] sm:$0xff]
        %v295 = vld [vmem:[%s227] sm:$0x7]
        %297 = vset.pattern.permute.xlu0 0
        %298 = vperm.xlu0 %297, %v231
        %v299 = vpop.permute.xlu0 %298
        %302 = vset.pattern.permute.xlu0 0
        %303 = vperm.xlu0 %302, %v232
        %v304 = vpop.permute.xlu0 %303
        %307 = vset.pattern.permute.xlu0 0
        %308 = vperm.xlu0 %307, %v233
        %v309 = vpop.permute.xlu0 %308
        %312 = vset.pattern.permute.xlu0 0
        %313 = vperm.xlu0 %312, %v234
        %v314 = vpop.permute.xlu0 %313
        %317 = vset.pattern.permute.xlu0 0
        %318 = vperm.xlu0 %317, %v235
        %v319 = vpop.permute.xlu0 %318
        %322 = vset.pattern.permute.xlu0 0
        %323 = vperm.xlu0 %322, %v236
        %v324 = vpop.permute.xlu0 %323
        %327 = vset.pattern.permute.xlu0 0
        %328 = vperm.xlu0 %327, %v237
        %v329 = vpop.permute.xlu0 %328
        %332 = vset.pattern.permute.xlu0 0
        %333 = vperm.xlu0 %332, %v238
        %v334 = vpop.permute.xlu0 %333
        %337 = vset.pattern.permute.xlu0 0
        %338 = vperm.xlu0 %337, %v239
        %v339 = vpop.permute.xlu0 %338
        %342 = vset.pattern.permute.xlu0 0
        %343 = vperm.xlu0 %342, %v240
        %v344 = vpop.permute.xlu0 %343
        %347 = vset.pattern.permute.xlu0 0
        %348 = vperm.xlu0 %347, %v241
        %v349 = vpop.permute.xlu0 %348
        %352 = vset.pattern.permute.xlu0 0
        %353 = vperm.xlu0 %352, %v242
        %v354 = vpop.permute.xlu0 %353
        %357 = vset.pattern.permute.xlu0 0
        %358 = vperm.xlu0 %357, %v243
        %v359 = vpop.permute.xlu0 %358
        %362 = vset.pattern.permute.xlu0 0
        %363 = vperm.xlu0 %362, %v244
        %v364 = vpop.permute.xlu0 %363
        %367 = vset.pattern.permute.xlu0 0
        %368 = vperm.xlu0 %367, %v245
        %v369 = vpop.permute.xlu0 %368
        %372 = vset.pattern.permute.xlu0 0
        %373 = vperm.xlu0 %372, %v246
        %v374 = vpop.permute.xlu0 %373
        %377 = vset.pattern.permute.xlu0 0
        %378 = vperm.xlu0 %377, %v247
        %v379 = vpop.permute.xlu0 %378
        %382 = vset.pattern.permute.xlu0 0
        %383 = vperm.xlu0 %382, %v248
        %v384 = vpop.permute.xlu0 %383
        %387 = vset.pattern.permute.xlu0 0
        %388 = vperm.xlu0 %387, %v249
        %v389 = vpop.permute.xlu0 %388
        %392 = vset.pattern.permute.xlu0 0
        %393 = vperm.xlu0 %392, %v250
        %v394 = vpop.permute.xlu0 %393
        %397 = vset.pattern.permute.xlu0 0
        %398 = vperm.xlu0 %397, %v251
        %v399 = vpop.permute.xlu0 %398
        %402 = vset.pattern.permute.xlu0 0
        %403 = vperm.xlu0 %402, %v252
        %v404 = vpop.permute.xlu0 %403
        %407 = vset.pattern.permute.xlu0 0
        %408 = vperm.xlu0 %407, %v253
        %v409 = vpop.permute.xlu0 %408
        %412 = vset.pattern.permute.xlu0 0
        %413 = vperm.xlu0 %412, %v254
        %v414 = vpop.permute.xlu0 %413
        %417 = vset.pattern.permute.xlu0 0
        %418 = vperm.xlu0 %417, %v255
        %v419 = vpop.permute.xlu0 %418
        %422 = vset.pattern.permute.xlu0 0
        %423 = vperm.xlu0 %422, %v256
        %v424 = vpop.permute.xlu0 %423
        %427 = vset.pattern.permute.xlu0 0
        %428 = vperm.xlu0 %427, %v257
        %v429 = vpop.permute.xlu0 %428
        %432 = vset.pattern.permute.xlu0 0
        %433 = vperm.xlu0 %432, %v258
        %v434 = vpop.permute.xlu0 %433
        %437 = vset.pattern.permute.xlu0 0
        %438 = vperm.xlu0 %437, %v259
        %v439 = vpop.permute.xlu0 %438
        %442 = vset.pattern.permute.xlu0 0
        %443 = vperm.xlu0 %442, %v260
        %v444 = vpop.permute.xlu0 %443
        %447 = vset.pattern.permute.xlu0 0
        %448 = vperm.xlu0 %447, %v261
        %v449 = vpop.permute.xlu0 %448
        %452 = vset.pattern.permute.xlu0 0
        %453 = vperm.xlu0 %452, %v262
        %v454 = vpop.permute.xlu0 %453
        %v456 = vlaneseq
        %v457 = vshrl.u32 %v456, 7
        %v458 = vsub.s32 0, %v457
        %v459 = vrot.slane %v295, %v458
        %v460 = vmul.f32 %v299, %v459
        %v461 = vmul.f32 %v304, %v459
        %v462 = vmul.f32 %v309, %v459
        %v463 = vmul.f32 %v314, %v459
        %v464 = vmul.f32 %v319, %v459
        %v465 = vmul.f32 %v324, %v459
        %v466 = vmul.f32 %v329, %v459
        %v467 = vmul.f32 %v334, %v459
        %v468 = vmul.f32 %v339, %v459
        %v469 = vmul.f32 %v344, %v459
        %v470 = vmul.f32 %v349, %v459
        %v471 = vmul.f32 %v354, %v459
        %v472 = vmul.f32 %v359, %v459
        %v473 = vmul.f32 %v364, %v459
        %v474 = vmul.f32 %v369, %v459
        %v475 = vmul.f32 %v374, %v459
        %v476 = vmul.f32 %v379, %v459
        %v477 = vmul.f32 %v384, %v459
        %v478 = vmul.f32 %v389, %v459
        %v479 = vmul.f32 %v394, %v459
        %v480 = vmul.f32 %v399, %v459
        %v481 = vmul.f32 %v404, %v459
        %v482 = vmul.f32 %v409, %v459
        %v483 = vmul.f32 %v414, %v459
        %v484 = vmul.f32 %v419, %v459
        %v485 = vmul.f32 %v424, %v459
        %v486 = vmul.f32 %v429, %v459
        %v487 = vmul.f32 %v434, %v459
        %v488 = vmul.f32 %v439, %v459
        %v489 = vmul.f32 %v444, %v459
        %v490 = vmul.f32 %v449, %v459
        %v491 = vmul.f32 %v454, %v459
        %493 = vset.pattern.permute.xlu0 0
        %494 = vperm.xlu0 %493, %v263
        %v495 = vpop.permute.xlu0 %494
        %498 = vset.pattern.permute.xlu0 0
        %499 = vperm.xlu0 %498, %v264
        %v500 = vpop.permute.xlu0 %499
        %503 = vset.pattern.permute.xlu0 0
        %504 = vperm.xlu0 %503, %v265
        %v505 = vpop.permute.xlu0 %504
        %508 = vset.pattern.permute.xlu0 0
        %509 = vperm.xlu0 %508, %v266
        %v510 = vpop.permute.xlu0 %509
        %513 = vset.pattern.permute.xlu0 0
        %514 = vperm.xlu0 %513, %v267
        %v515 = vpop.permute.xlu0 %514
        %518 = vset.pattern.permute.xlu0 0
        %519 = vperm.xlu0 %518, %v268
        %v520 = vpop.permute.xlu0 %519
        %523 = vset.pattern.permute.xlu0 0
        %524 = vperm.xlu0 %523, %v269
        %v525 = vpop.permute.xlu0 %524
        %528 = vset.pattern.permute.xlu0 0
        %529 = vperm.xlu0 %528, %v270
        %v530 = vpop.permute.xlu0 %529
        %533 = vset.pattern.permute.xlu0 0
        %534 = vperm.xlu0 %533, %v271
        %v535 = vpop.permute.xlu0 %534
        %538 = vset.pattern.permute.xlu0 0
        %539 = vperm.xlu0 %538, %v272
        %v540 = vpop.permute.xlu0 %539
        %543 = vset.pattern.permute.xlu0 0
        %544 = vperm.xlu0 %543, %v273
        %v545 = vpop.permute.xlu0 %544
        %548 = vset.pattern.permute.xlu0 0
        %549 = vperm.xlu0 %548, %v274
        %v550 = vpop.permute.xlu0 %549
        %553 = vset.pattern.permute.xlu0 0
        %554 = vperm.xlu0 %553, %v275
        %v555 = vpop.permute.xlu0 %554
        %558 = vset.pattern.permute.xlu0 0
        %559 = vperm.xlu0 %558, %v276
        %v560 = vpop.permute.xlu0 %559
        %563 = vset.pattern.permute.xlu0 0
        %564 = vperm.xlu0 %563, %v277
        %v565 = vpop.permute.xlu0 %564
        %568 = vset.pattern.permute.xlu0 0
        %569 = vperm.xlu0 %568, %v278
        %v570 = vpop.permute.xlu0 %569
        %573 = vset.pattern.permute.xlu0 0
        %574 = vperm.xlu0 %573, %v279
        %v575 = vpop.permute.xlu0 %574
        %578 = vset.pattern.permute.xlu0 0
        %579 = vperm.xlu0 %578, %v280
        %v580 = vpop.permute.xlu0 %579
        %583 = vset.pattern.permute.xlu0 0
        %584 = vperm.xlu0 %583, %v281
        %v585 = vpop.permute.xlu0 %584
        %588 = vset.pattern.permute.xlu0 0
        %589 = vperm.xlu0 %588, %v282
        %v590 = vpop.permute.xlu0 %589
        %593 = vset.pattern.permute.xlu0 0
        %594 = vperm.xlu0 %593, %v283
        %v595 = vpop.permute.xlu0 %594
        %598 = vset.pattern.permute.xlu0 0
        %599 = vperm.xlu0 %598, %v284
        %v600 = vpop.permute.xlu0 %599
        %603 = vset.pattern.permute.xlu0 0
        %604 = vperm.xlu0 %603, %v285
        %v605 = vpop.permute.xlu0 %604
        %608 = vset.pattern.permute.xlu0 0
        %609 = vperm.xlu0 %608, %v286
        %v610 = vpop.permute.xlu0 %609
        %613 = vset.pattern.permute.xlu0 0
        %614 = vperm.xlu0 %613, %v287
        %v615 = vpop.permute.xlu0 %614
        %618 = vset.pattern.permute.xlu0 0
        %619 = vperm.xlu0 %618, %v288
        %v620 = vpop.permute.xlu0 %619
        %623 = vset.pattern.permute.xlu0 0
        %624 = vperm.xlu0 %623, %v289
        %v625 = vpop.permute.xlu0 %624
        %628 = vset.pattern.permute.xlu0 0
        %629 = vperm.xlu0 %628, %v290
        %v630 = vpop.permute.xlu0 %629
        %633 = vset.pattern.permute.xlu0 0
        %634 = vperm.xlu0 %633, %v291
        %v635 = vpop.permute.xlu0 %634
        %638 = vset.pattern.permute.xlu0 0
        %639 = vperm.xlu0 %638, %v292
        %v640 = vpop.permute.xlu0 %639
        %643 = vset.pattern.permute.xlu0 0
        %644 = vperm.xlu0 %643, %v293
        %v645 = vpop.permute.xlu0 %644
        %648 = vset.pattern.permute.xlu0 0
        %649 = vperm.xlu0 %648, %v294
        %v650 = vpop.permute.xlu0 %649
        %v652 = vlaneseq
        %v653 = vshrl.u32 %v652, 7
        %v654 = vsub.s32 1, %v653
        %v655 = vrot.slane %v295, %v654
        %v656 = vmul.f32 %v495, %v655
        %v657 = vmul.f32 %v500, %v655
        %v658 = vmul.f32 %v505, %v655
        %v659 = vmul.f32 %v510, %v655
        %v660 = vmul.f32 %v515, %v655
        %v661 = vmul.f32 %v520, %v655
        %v662 = vmul.f32 %v525, %v655
        %v663 = vmul.f32 %v530, %v655
        %v664 = vmul.f32 %v535, %v655
        %v665 = vmul.f32 %v540, %v655
        %v666 = vmul.f32 %v545, %v655
        %v667 = vmul.f32 %v550, %v655
        %v668 = vmul.f32 %v555, %v655
        %v669 = vmul.f32 %v560, %v655
        %v670 = vmul.f32 %v565, %v655
        %v671 = vmul.f32 %v570, %v655
        %v672 = vmul.f32 %v575, %v655
        %v673 = vmul.f32 %v580, %v655
        %v674 = vmul.f32 %v585, %v655
        %v675 = vmul.f32 %v590, %v655
        %v676 = vmul.f32 %v595, %v655
        %v677 = vmul.f32 %v600, %v655
        %v678 = vmul.f32 %v605, %v655
        %v679 = vmul.f32 %v610, %v655
        %v680 = vmul.f32 %v615, %v655
        %v681 = vmul.f32 %v620, %v655
        %v682 = vmul.f32 %v625, %v655
        %v683 = vmul.f32 %v630, %v655
        %v684 = vmul.f32 %v635, %v655
        %v685 = vmul.f32 %v640, %v655
        %v686 = vmul.f32 %v645, %v655
        %v687 = vmul.f32 %v650, %v655
        %v688 = vadd.f32 %v460, %v656
        %v689 = vadd.f32 %v461, %v657
        %v690 = vadd.f32 %v462, %v658
        %v691 = vadd.f32 %v463, %v659
        %v692 = vadd.f32 %v464, %v660
        %v693 = vadd.f32 %v465, %v661
        %v694 = vadd.f32 %v466, %v662
        %v695 = vadd.f32 %v467, %v663
        %v696 = vadd.f32 %v468, %v664
        %v697 = vadd.f32 %v469, %v665
        %v698 = vadd.f32 %v470, %v666
        %v699 = vadd.f32 %v471, %v667
        %v700 = vadd.f32 %v472, %v668
        %v701 = vadd.f32 %v473, %v669
        %v702 = vadd.f32 %v474, %v670
        %v703 = vadd.f32 %v475, %v671
        %v704 = vadd.f32 %v476, %v672
        %v705 = vadd.f32 %v477, %v673
        %v706 = vadd.f32 %v478, %v674
        %v707 = vadd.f32 %v479, %v675
        %v708 = vadd.f32 %v480, %v676
        %v709 = vadd.f32 %v481, %v677
        %v710 = vadd.f32 %v482, %v678
        %v711 = vadd.f32 %v483, %v679
        %v712 = vadd.f32 %v484, %v680
        %v713 = vadd.f32 %v485, %v681
        %v714 = vadd.f32 %v486, %v682
        %v715 = vadd.f32 %v487, %v683
        %v716 = vadd.f32 %v488, %v684
        %v717 = vadd.f32 %v489, %v685
        %v718 = vadd.f32 %v490, %v686
        %v719 = vadd.f32 %v491, %v687
        %v720 = vlaneseq
        %v721 = vshrl.u32 %v720, 7
        %v722 = vsub.s32 2, %v721
        %v723 = vrot.slane %v295, %v722
        %v724 = vadd.f32 %v688, %v723
        %v725 = vadd.f32 %v689, %v723
        %v726 = vadd.f32 %v690, %v723
        %v727 = vadd.f32 %v691, %v723
        %v728 = vadd.f32 %v692, %v723
        %v729 = vadd.f32 %v693, %v723
        %v730 = vadd.f32 %v694, %v723
        %v731 = vadd.f32 %v695, %v723
        %v732 = vadd.f32 %v696, %v723
        %v733 = vadd.f32 %v697, %v723
        %v734 = vadd.f32 %v698, %v723
        %v735 = vadd.f32 %v699, %v723
        %v736 = vadd.f32 %v700, %v723
        %v737 = vadd.f32 %v701, %v723
        %v738 = vadd.f32 %v702, %v723
        %v739 = vadd.f32 %v703, %v723
        %v740 = vadd.f32 %v704, %v723
        %v741 = vadd.f32 %v705, %v723
        %v742 = vadd.f32 %v706, %v723
        %v743 = vadd.f32 %v707, %v723
        %v744 = vadd.f32 %v708, %v723
        %v745 = vadd.f32 %v709, %v723
        %v746 = vadd.f32 %v710, %v723
        %v747 = vadd.f32 %v711, %v723
        %v748 = vadd.f32 %v712, %v723
        %v749 = vadd.f32 %v713, %v723
        %v750 = vadd.f32 %v714, %v723
        %v751 = vadd.f32 %v715, %v723
        %v752 = vadd.f32 %v716, %v723
        %v753 = vadd.f32 %v717, %v723
        %v754 = vadd.f32 %v718, %v723
        %v755 = vadd.f32 %v719, %v723
        %v756 = vmul.f32 %v724, %v724
        %v757 = vmul.f32 %v725, %v725
        %v758 = vmul.f32 %v726, %v726
        %v759 = vmul.f32 %v727, %v727
        %v760 = vmul.f32 %v728, %v728
        %v761 = vmul.f32 %v729, %v729
        %v762 = vmul.f32 %v730, %v730
        %v763 = vmul.f32 %v731, %v731
        %v764 = vmul.f32 %v732, %v732
        %v765 = vmul.f32 %v733, %v733
        %v766 = vmul.f32 %v734, %v734
        %v767 = vmul.f32 %v735, %v735
        %v768 = vmul.f32 %v736, %v736
        %v769 = vmul.f32 %v737, %v737
        %v770 = vmul.f32 %v738, %v738
        %v771 = vmul.f32 %v739, %v739
        %v772 = vmul.f32 %v740, %v740
        %v773 = vmul.f32 %v741, %v741
        %v774 = vmul.f32 %v742, %v742
        %v775 = vmul.f32 %v743, %v743
        %v776 = vmul.f32 %v744, %v744
        %v777 = vmul.f32 %v745, %v745
        %v778 = vmul.f32 %v746, %v746
        %v779 = vmul.f32 %v747, %v747
        %v780 = vmul.f32 %v748, %v748
        %v781 = vmul.f32 %v749, %v749
        %v782 = vmul.f32 %v750, %v750
        %v783 = vmul.f32 %v751, %v751
        %v784 = vmul.f32 %v752, %v752
        %v785 = vmul.f32 %v753, %v753
        %v786 = vmul.f32 %v754, %v754
        %v787 = vmul.f32 %v755, %v755
        %788 = vadd.xlane.f32.xlu0 %v756
        %v789 = vpop.xlane.xlu0 %788
        %790 = vadd.xlane.f32.xlu0 %v757
        %v791 = vpop.xlane.xlu0 %790
        %792 = vadd.xlane.f32.xlu0 %v758
        %v793 = vpop.xlane.xlu0 %792
        %794 = vadd.xlane.f32.xlu0 %v759
        %v795 = vpop.xlane.xlu0 %794
        %796 = vadd.xlane.f32.xlu0 %v760
        %v797 = vpop.xlane.xlu0 %796
        %798 = vadd.xlane.f32.xlu0 %v761
        %v799 = vpop.xlane.xlu0 %798
        %800 = vadd.xlane.f32.xlu0 %v762
        %v801 = vpop.xlane.xlu0 %800
        %802 = vadd.xlane.f32.xlu0 %v763
        %v803 = vpop.xlane.xlu0 %802
        %804 = vadd.xlane.f32.xlu0 %v764
        %v805 = vpop.xlane.xlu0 %804
        %806 = vadd.xlane.f32.xlu0 %v765
        %v807 = vpop.xlane.xlu0 %806
        %808 = vadd.xlane.f32.xlu0 %v766
        %v809 = vpop.xlane.xlu0 %808
        %810 = vadd.xlane.f32.xlu0 %v767
        %v811 = vpop.xlane.xlu0 %810
        %812 = vadd.xlane.f32.xlu0 %v768
        %v813 = vpop.xlane.xlu0 %812
        %814 = vadd.xlane.f32.xlu0 %v769
        %v815 = vpop.xlane.xlu0 %814
        %816 = vadd.xlane.f32.xlu0 %v770
        %v817 = vpop.xlane.xlu0 %816
        %818 = vadd.xlane.f32.xlu0 %v771
        %v819 = vpop.xlane.xlu0 %818
        %820 = vadd.xlane.f32.xlu0 %v772
        %v821 = vpop.xlane.xlu0 %820
        %822 = vadd.xlane.f32.xlu0 %v773
        %v823 = vpop.xlane.xlu0 %822
        %824 = vadd.xlane.f32.xlu0 %v774
        %v825 = vpop.xlane.xlu0 %824
        %826 = vadd.xlane.f32.xlu0 %v775
        %v827 = vpop.xlane.xlu0 %826
        %828 = vadd.xlane.f32.xlu0 %v776
        %v829 = vpop.xlane.xlu0 %828
        %830 = vadd.xlane.f32.xlu0 %v777
        %v831 = vpop.xlane.xlu0 %830
        %832 = vadd.xlane.f32.xlu0 %v778
        %v833 = vpop.xlane.xlu0 %832
        %834 = vadd.xlane.f32.xlu0 %v779
        %v835 = vpop.xlane.xlu0 %834
        %836 = vadd.xlane.f32.xlu0 %v780
        %v837 = vpop.xlane.xlu0 %836
        %838 = vadd.xlane.f32.xlu0 %v781
        %v839 = vpop.xlane.xlu0 %838
        %840 = vadd.xlane.f32.xlu0 %v782
        %v841 = vpop.xlane.xlu0 %840
        %842 = vadd.xlane.f32.xlu0 %v783
        %v843 = vpop.xlane.xlu0 %842
        %844 = vadd.xlane.f32.xlu0 %v784
        %v845 = vpop.xlane.xlu0 %844
        %846 = vadd.xlane.f32.xlu0 %v785
        %v847 = vpop.xlane.xlu0 %846
        %848 = vadd.xlane.f32.xlu0 %v786
        %v849 = vpop.xlane.xlu0 %848
        %850 = vadd.xlane.f32.xlu0 %v787
        %v851 = vpop.xlane.xlu0 %850
        %v852 = vrsqrt.pop %v789
        %v853 = vmul.f32 %v789, %v852
        %vm854 = vcmp.eq.f32.partialorder %v789, inf
        %v855 = vsel %vm854, %v789, %v853
        %vm856 = vcmp.eq.f32.partialorder %v789, 0.0
        %v857 = vand.u32 %v789, 2147483648
        %v858 = vsel %vm856, %v857, %v855
        %v859 = vrsqrt.pop %v791
        %v860 = vmul.f32 %v791, %v859
        %vm861 = vcmp.eq.f32.partialorder %v791, inf
        %v862 = vsel %vm861, %v791, %v860
        %vm863 = vcmp.eq.f32.partialorder %v791, 0.0
        %v864 = vand.u32 %v791, 2147483648
        %v865 = vsel %vm863, %v864, %v862
        %v866 = vrsqrt.pop %v793
        %v867 = vmul.f32 %v793, %v866
        %vm868 = vcmp.eq.f32.partialorder %v793, inf
        %v869 = vsel %vm868, %v793, %v867
        %vm870 = vcmp.eq.f32.partialorder %v793, 0.0
        %v871 = vand.u32 %v793, 2147483648
        %v872 = vsel %vm870, %v871, %v869
        %v873 = vrsqrt.pop %v795
        %v874 = vmul.f32 %v795, %v873
        %vm875 = vcmp.eq.f32.partialorder %v795, inf
        %v876 = vsel %vm875, %v795, %v874
        %vm877 = vcmp.eq.f32.partialorder %v795, 0.0
        %v878 = vand.u32 %v795, 2147483648
        %v879 = vsel %vm877, %v878, %v876
        %v880 = vrsqrt.pop %v797
        %v881 = vmul.f32 %v797, %v880
        %vm882 = vcmp.eq.f32.partialorder %v797, inf
        %v883 = vsel %vm882, %v797, %v881
        %vm884 = vcmp.eq.f32.partialorder %v797, 0.0
        %v885 = vand.u32 %v797, 2147483648
        %v886 = vsel %vm884, %v885, %v883
        %v887 = vrsqrt.pop %v799
        %v888 = vmul.f32 %v799, %v887
        %vm889 = vcmp.eq.f32.partialorder %v799, inf
        %v890 = vsel %vm889, %v799, %v888
        %vm891 = vcmp.eq.f32.partialorder %v799, 0.0
        %v892 = vand.u32 %v799, 2147483648
        %v893 = vsel %vm891, %v892, %v890
        %v894 = vrsqrt.pop %v801
        %v895 = vmul.f32 %v801, %v894
        %vm896 = vcmp.eq.f32.partialorder %v801, inf
        %v897 = vsel %vm896, %v801, %v895
        %vm898 = vcmp.eq.f32.partialorder %v801, 0.0
        %v899 = vand.u32 %v801, 2147483648
        %v900 = vsel %vm898, %v899, %v897
        %v901 = vrsqrt.pop %v803
        %v902 = vmul.f32 %v803, %v901
        %vm903 = vcmp.eq.f32.partialorder %v803, inf
        %v904 = vsel %vm903, %v803, %v902
        %vm905 = vcmp.eq.f32.partialorder %v803, 0.0
        %v906 = vand.u32 %v803, 2147483648
        %v907 = vsel %vm905, %v906, %v904
        %v908 = vrsqrt.pop %v805
        %v909 = vmul.f32 %v805, %v908
        %vm910 = vcmp.eq.f32.partialorder %v805, inf
        %v911 = vsel %vm910, %v805, %v909
        %vm912 = vcmp.eq.f32.partialorder %v805, 0.0
        %v913 = vand.u32 %v805, 2147483648
        %v914 = vsel %vm912, %v913, %v911
        %v915 = vrsqrt.pop %v807
        %v916 = vmul.f32 %v807, %v915
        %vm917 = vcmp.eq.f32.partialorder %v807, inf
        %v918 = vsel %vm917, %v807, %v916
        %vm919 = vcmp.eq.f32.partialorder %v807, 0.0
        %v920 = vand.u32 %v807, 2147483648
        %v921 = vsel %vm919, %v920, %v918
        %v922 = vrsqrt.pop %v809
        %v923 = vmul.f32 %v809, %v922
        %vm924 = vcmp.eq.f32.partialorder %v809, inf
        %v925 = vsel %vm924, %v809, %v923
        %vm926 = vcmp.eq.f32.partialorder %v809, 0.0
        %v927 = vand.u32 %v809, 2147483648
        %v928 = vsel %vm926, %v927, %v925
        %v929 = vrsqrt.pop %v811
        %v930 = vmul.f32 %v811, %v929
        %vm931 = vcmp.eq.f32.partialorder %v811, inf
        %v932 = vsel %vm931, %v811, %v930
        %vm933 = vcmp.eq.f32.partialorder %v811, 0.0
        %v934 = vand.u32 %v811, 2147483648
        %v935 = vsel %vm933, %v934, %v932
        %v936 = vrsqrt.pop %v813
        %v937 = vmul.f32 %v813, %v936
        %vm938 = vcmp.eq.f32.partialorder %v813, inf
        %v939 = vsel %vm938, %v813, %v937
        %vm940 = vcmp.eq.f32.partialorder %v813, 0.0
        %v941 = vand.u32 %v813, 2147483648
        %v942 = vsel %vm940, %v941, %v939
        %v943 = vrsqrt.pop %v815
        %v944 = vmul.f32 %v815, %v943
        %vm945 = vcmp.eq.f32.partialorder %v815, inf
        %v946 = vsel %vm945, %v815, %v944
        %vm947 = vcmp.eq.f32.partialorder %v815, 0.0
        %v948 = vand.u32 %v815, 2147483648
        %v949 = vsel %vm947, %v948, %v946
        %v950 = vrsqrt.pop %v817
        %v951 = vmul.f32 %v817, %v950
        %vm952 = vcmp.eq.f32.partialorder %v817, inf
        %v953 = vsel %vm952, %v817, %v951
        %vm954 = vcmp.eq.f32.partialorder %v817, 0.0
        %v955 = vand.u32 %v817, 2147483648
        %v956 = vsel %vm954, %v955, %v953
        %v957 = vrsqrt.pop %v819
        %v958 = vmul.f32 %v819, %v957
        %vm959 = vcmp.eq.f32.partialorder %v819, inf
        %v960 = vsel %vm959, %v819, %v958
        %vm961 = vcmp.eq.f32.partialorder %v819, 0.0
        %v962 = vand.u32 %v819, 2147483648
        %v963 = vsel %vm961, %v962, %v960
        %v964 = vrsqrt.pop %v821
        %v965 = vmul.f32 %v821, %v964
        %vm966 = vcmp.eq.f32.partialorder %v821, inf
        %v967 = vsel %vm966, %v821, %v965
        %vm968 = vcmp.eq.f32.partialorder %v821, 0.0
        %v969 = vand.u32 %v821, 2147483648
        %v970 = vsel %vm968, %v969, %v967
        %v971 = vrsqrt.pop %v823
        %v972 = vmul.f32 %v823, %v971
        %vm973 = vcmp.eq.f32.partialorder %v823, inf
        %v974 = vsel %vm973, %v823, %v972
        %vm975 = vcmp.eq.f32.partialorder %v823, 0.0
        %v976 = vand.u32 %v823, 2147483648
        %v977 = vsel %vm975, %v976, %v974
        %v978 = vrsqrt.pop %v825
        %v979 = vmul.f32 %v825, %v978
        %vm980 = vcmp.eq.f32.partialorder %v825, inf
        %v981 = vsel %vm980, %v825, %v979
        %vm982 = vcmp.eq.f32.partialorder %v825, 0.0
        %v983 = vand.u32 %v825, 2147483648
        %v984 = vsel %vm982, %v983, %v981
        %v985 = vrsqrt.pop %v827
        %v986 = vmul.f32 %v827, %v985
        %vm987 = vcmp.eq.f32.partialorder %v827, inf
        %v988 = vsel %vm987, %v827, %v986
        %vm989 = vcmp.eq.f32.partialorder %v827, 0.0
        %v990 = vand.u32 %v827, 2147483648
        %v991 = vsel %vm989, %v990, %v988
        %v992 = vrsqrt.pop %v829
        %v993 = vmul.f32 %v829, %v992
        %vm994 = vcmp.eq.f32.partialorder %v829, inf
        %v995 = vsel %vm994, %v829, %v993
        %vm996 = vcmp.eq.f32.partialorder %v829, 0.0
        %v997 = vand.u32 %v829, 2147483648
        %v998 = vsel %vm996, %v997, %v995
        %v999 = vrsqrt.pop %v831
        %v1000 = vmul.f32 %v831, %v999
        %vm1001 = vcmp.eq.f32.partialorder %v831, inf
        %v1002 = vsel %vm1001, %v831, %v1000
        %vm1003 = vcmp.eq.f32.partialorder %v831, 0.0
        %v1004 = vand.u32 %v831, 2147483648
        %v1005 = vsel %vm1003, %v1004, %v1002
        %v1006 = vrsqrt.pop %v833
        %v1007 = vmul.f32 %v833, %v1006
        %vm1008 = vcmp.eq.f32.partialorder %v833, inf
        %v1009 = vsel %vm1008, %v833, %v1007
        %vm1010 = vcmp.eq.f32.partialorder %v833, 0.0
        %v1011 = vand.u32 %v833, 2147483648
        %v1012 = vsel %vm1010, %v1011, %v1009
        %v1013 = vrsqrt.pop %v835
        %v1014 = vmul.f32 %v835, %v1013
        %vm1015 = vcmp.eq.f32.partialorder %v835, inf
        %v1016 = vsel %vm1015, %v835, %v1014
        %vm1017 = vcmp.eq.f32.partialorder %v835, 0.0
        %v1018 = vand.u32 %v835, 2147483648
        %v1019 = vsel %vm1017, %v1018, %v1016
        %v1020 = vrsqrt.pop %v837
        %v1021 = vmul.f32 %v837, %v1020
        %vm1022 = vcmp.eq.f32.partialorder %v837, inf
        %v1023 = vsel %vm1022, %v837, %v1021
        %vm1024 = vcmp.eq.f32.partialorder %v837, 0.0
        %v1025 = vand.u32 %v837, 2147483648
        %v1026 = vsel %vm1024, %v1025, %v1023
        %v1027 = vrsqrt.pop %v839
        %v1028 = vmul.f32 %v839, %v1027
        %vm1029 = vcmp.eq.f32.partialorder %v839, inf
        %v1030 = vsel %vm1029, %v839, %v1028
        %vm1031 = vcmp.eq.f32.partialorder %v839, 0.0
        %v1032 = vand.u32 %v839, 2147483648
        %v1033 = vsel %vm1031, %v1032, %v1030
        %v1034 = vrsqrt.pop %v841
        %v1035 = vmul.f32 %v841, %v1034
        %vm1036 = vcmp.eq.f32.partialorder %v841, inf
        %v1037 = vsel %vm1036, %v841, %v1035
        %vm1038 = vcmp.eq.f32.partialorder %v841, 0.0
        %v1039 = vand.u32 %v841, 2147483648
        %v1040 = vsel %vm1038, %v1039, %v1037
        %v1041 = vrsqrt.pop %v843
        %v1042 = vmul.f32 %v843, %v1041
        %vm1043 = vcmp.eq.f32.partialorder %v843, inf
        %v1044 = vsel %vm1043, %v843, %v1042
        %vm1045 = vcmp.eq.f32.partialorder %v843, 0.0
        %v1046 = vand.u32 %v843, 2147483648
        %v1047 = vsel %vm1045, %v1046, %v1044
        %v1048 = vrsqrt.pop %v845
        %v1049 = vmul.f32 %v845, %v1048
        %vm1050 = vcmp.eq.f32.partialorder %v845, inf
        %v1051 = vsel %vm1050, %v845, %v1049
        %vm1052 = vcmp.eq.f32.partialorder %v845, 0.0
        %v1053 = vand.u32 %v845, 2147483648
        %v1054 = vsel %vm1052, %v1053, %v1051
        %v1055 = vrsqrt.pop %v847
        %v1056 = vmul.f32 %v847, %v1055
        %vm1057 = vcmp.eq.f32.partialorder %v847, inf
        %v1058 = vsel %vm1057, %v847, %v1056
        %vm1059 = vcmp.eq.f32.partialorder %v847, 0.0
        %v1060 = vand.u32 %v847, 2147483648
        %v1061 = vsel %vm1059, %v1060, %v1058
        %v1062 = vrsqrt.pop %v849
        %v1063 = vmul.f32 %v849, %v1062
        %vm1064 = vcmp.eq.f32.partialorder %v849, inf
        %v1065 = vsel %vm1064, %v849, %v1063
        %vm1066 = vcmp.eq.f32.partialorder %v849, 0.0
        %v1067 = vand.u32 %v849, 2147483648
        %v1068 = vsel %vm1066, %v1067, %v1065
        %v1069 = vrsqrt.pop %v851
        %v1070 = vmul.f32 %v851, %v1069
        %vm1071 = vcmp.eq.f32.partialorder %v851, inf
        %v1072 = vsel %vm1071, %v851, %v1070
        %vm1073 = vcmp.eq.f32.partialorder %v851, 0.0
        %v1074 = vand.u32 %v851, 2147483648
        %v1075 = vsel %vm1073, %v1074, %v1072
        %v1076 = vadd.f32 %v858, 1e-07
        %v1077 = vadd.f32 %v865, 1e-07
        %v1078 = vadd.f32 %v872, 1e-07
        %v1079 = vadd.f32 %v879, 1e-07
        %v1080 = vadd.f32 %v886, 1e-07
        %v1081 = vadd.f32 %v893, 1e-07
        %v1082 = vadd.f32 %v900, 1e-07
        %v1083 = vadd.f32 %v907, 1e-07
        %v1084 = vadd.f32 %v914, 1e-07
        %v1085 = vadd.f32 %v921, 1e-07
        %v1086 = vadd.f32 %v928, 1e-07
        %v1087 = vadd.f32 %v935, 1e-07
        %v1088 = vadd.f32 %v942, 1e-07
        %v1089 = vadd.f32 %v949, 1e-07
        %v1090 = vadd.f32 %v956, 1e-07
        %v1091 = vadd.f32 %v963, 1e-07
        %v1092 = vadd.f32 %v970, 1e-07
        %v1093 = vadd.f32 %v977, 1e-07
        %v1094 = vadd.f32 %v984, 1e-07
        %v1095 = vadd.f32 %v991, 1e-07
        %v1096 = vadd.f32 %v998, 1e-07
        %v1097 = vadd.f32 %v1005, 1e-07
        %v1098 = vadd.f32 %v1012, 1e-07
        %v1099 = vadd.f32 %v1019, 1e-07
        %v1100 = vadd.f32 %v1026, 1e-07
        %v1101 = vadd.f32 %v1033, 1e-07
        %v1102 = vadd.f32 %v1040, 1e-07
        %v1103 = vadd.f32 %v1047, 1e-07
        %v1104 = vadd.f32 %v1054, 1e-07
        %v1105 = vadd.f32 %v1061, 1e-07
        %v1106 = vadd.f32 %v1068, 1e-07
        %v1107 = vadd.f32 %v1075, 1e-07
        %v1108 = vrcp.pop %v1076
        %v1109 = vrcp.pop %v1077
        %v1110 = vrcp.pop %v1078
        %v1111 = vrcp.pop %v1079
        %v1112 = vrcp.pop %v1080
        %v1113 = vrcp.pop %v1081
        %v1114 = vrcp.pop %v1082
        %v1115 = vrcp.pop %v1083
        %v1116 = vrcp.pop %v1084
        %v1117 = vrcp.pop %v1085
        %v1118 = vrcp.pop %v1086
        %v1119 = vrcp.pop %v1087
        %v1120 = vrcp.pop %v1088
        %v1121 = vrcp.pop %v1089
        %v1122 = vrcp.pop %v1090
        %v1123 = vrcp.pop %v1091
        %v1124 = vrcp.pop %v1092
        %v1125 = vrcp.pop %v1093
        %v1126 = vrcp.pop %v1094
        %v1127 = vrcp.pop %v1095
        %v1128 = vrcp.pop %v1096
        %v1129 = vrcp.pop %v1097
        %v1130 = vrcp.pop %v1098
        %v1131 = vrcp.pop %v1099
        %v1132 = vrcp.pop %v1100
        %v1133 = vrcp.pop %v1101
        %v1134 = vrcp.pop %v1102
        %v1135 = vrcp.pop %v1103
        %v1136 = vrcp.pop %v1104
        %v1137 = vrcp.pop %v1105
        %v1138 = vrcp.pop %v1106
        %v1139 = vrcp.pop %v1107
        %v1140 = vmul.f32 %v724, %v1108
        %v1141 = vmul.f32 %v725, %v1109
        %v1142 = vmul.f32 %v726, %v1110
        %v1143 = vmul.f32 %v727, %v1111
        %v1144 = vmul.f32 %v728, %v1112
        %v1145 = vmul.f32 %v729, %v1113
        %v1146 = vmul.f32 %v730, %v1114
        %v1147 = vmul.f32 %v731, %v1115
        %v1148 = vmul.f32 %v732, %v1116
        %v1149 = vmul.f32 %v733, %v1117
        %v1150 = vmul.f32 %v734, %v1118
        %v1151 = vmul.f32 %v735, %v1119
        %v1152 = vmul.f32 %v736, %v1120
        %v1153 = vmul.f32 %v737, %v1121
        %v1154 = vmul.f32 %v738, %v1122
        %v1155 = vmul.f32 %v739, %v1123
        %v1156 = vmul.f32 %v740, %v1124
        %v1157 = vmul.f32 %v741, %v1125
        %v1158 = vmul.f32 %v742, %v1126
        %v1159 = vmul.f32 %v743, %v1127
        %v1160 = vmul.f32 %v744, %v1128
        %v1161 = vmul.f32 %v745, %v1129
        %v1162 = vmul.f32 %v746, %v1130
        %v1163 = vmul.f32 %v747, %v1131
        %v1164 = vmul.f32 %v748, %v1132
        %v1165 = vmul.f32 %v749, %v1133
        %v1166 = vmul.f32 %v750, %v1134
        %v1167 = vmul.f32 %v751, %v1135
        %v1168 = vmul.f32 %v752, %v1136
        %v1169 = vmul.f32 %v753, %v1137
        %v1170 = vmul.f32 %v754, %v1138
        %v1171 = vmul.f32 %v755, %v1139
        %1172 = vst [vmem:[%s210] sm:$0xff] %v1140
        %1173 = vst [vmem:[%s210 + $0x8] sm:$0xff] %v1141
        %1174 = vst [vmem:[%s210 + $0x10] sm:$0xff] %v1142
        %1175 = vst [vmem:[%s210 + $0x18] sm:$0xff] %v1143
        %1176 = vst [vmem:[%s210 + $0x20] sm:$0xff] %v1144
        %1177 = vst [vmem:[%s210 + $0x28] sm:$0xff] %v1145
        %1178 = vst [vmem:[%s210 + $0x30] sm:$0xff] %v1146
        %1179 = vst [vmem:[%s210 + $0x38] sm:$0xff] %v1147
        %1180 = vst [vmem:[%s210 + $0x40] sm:$0xff] %v1148
        %1181 = vst [vmem:[%s210 + $0x48] sm:$0xff] %v1149
        %1182 = vst [vmem:[%s210 + $0x50] sm:$0xff] %v1150
        %1183 = vst [vmem:[%s210 + $0x58] sm:$0xff] %v1151
        %1184 = vst [vmem:[%s210 + $0x60] sm:$0xff] %v1152
        %1185 = vst [vmem:[%s210 + $0x68] sm:$0xff] %v1153
        %1186 = vst [vmem:[%s210 + $0x70] sm:$0xff] %v1154
        %1187 = vst [vmem:[%s210 + $0x78] sm:$0xff] %v1155
        %1188 = vst [vmem:[%s210 + $0x80] sm:$0xff] %v1156
        %1189 = vst [vmem:[%s210 + $0x88] sm:$0xff] %v1157
        %1190 = vst [vmem:[%s210 + $0x90] sm:$0xff] %v1158
        %1191 = vst [vmem:[%s210 + $0x98] sm:$0xff] %v1159
        %1192 = vst [vmem:[%s210 + $0xa0] sm:$0xff] %v1160
        %1193 = vst [vmem:[%s210 + $0xa8] sm:$0xff] %v1161
        %1194 = vst [vmem:[%s210 + $0xb0] sm:$0xff] %v1162
        %1195 = vst [vmem:[%s210 + $0xb8] sm:$0xff] %v1163
        %1196 = vst [vmem:[%s210 + $0xc0] sm:$0xff] %v1164
        %1197 = vst [vmem:[%s210 + $0xc8] sm:$0xff] %v1165
        %1198 = vst [vmem:[%s210 + $0xd0] sm:$0xff] %v1166
        %1199 = vst [vmem:[%s210 + $0xd8] sm:$0xff] %v1167
        %1200 = vst [vmem:[%s210 + $0xe0] sm:$0xff] %v1168
        %1201 = vst [vmem:[%s210 + $0xe8] sm:$0xff] %v1169
        %1202 = vst [vmem:[%s210 + $0xf0] sm:$0xff] %v1170
        %1203 = vst [vmem:[%s210 + $0xf8] sm:$0xff] %v1171
        %s1204 = scalar_lea.vmem %s227, 4
        %v1205 = vld [vmem:[%s1204] sm:$0x7]
        %v1206 = vlaneseq
        %v1207 = vshrl.u32 %v1206, 7
        %v1208 = vsub.s32 0, %v1207
        %v1209 = vrot.slane %v1205, %v1208
        %v1210 = vmul.f32 %v299, %v1209
        %v1211 = vmul.f32 %v304, %v1209
        %v1212 = vmul.f32 %v309, %v1209
        %v1213 = vmul.f32 %v314, %v1209
        %v1214 = vmul.f32 %v319, %v1209
        %v1215 = vmul.f32 %v324, %v1209
        %v1216 = vmul.f32 %v329, %v1209
        %v1217 = vmul.f32 %v334, %v1209
        %v1218 = vmul.f32 %v339, %v1209
        %v1219 = vmul.f32 %v344, %v1209
        %v1220 = vmul.f32 %v349, %v1209
        %v1221 = vmul.f32 %v354, %v1209
        %v1222 = vmul.f32 %v359, %v1209
        %v1223 = vmul.f32 %v364, %v1209
        %v1224 = vmul.f32 %v369, %v1209
        %v1225 = vmul.f32 %v374, %v1209
        %v1226 = vmul.f32 %v379, %v1209
        %v1227 = vmul.f32 %v384, %v1209
        %v1228 = vmul.f32 %v389, %v1209
        %v1229 = vmul.f32 %v394, %v1209
        %v1230 = vmul.f32 %v399, %v1209
        %v1231 = vmul.f32 %v404, %v1209
        %v1232 = vmul.f32 %v409, %v1209
        %v1233 = vmul.f32 %v414, %v1209
        %v1234 = vmul.f32 %v419, %v1209
        %v1235 = vmul.f32 %v424, %v1209
        %v1236 = vmul.f32 %v429, %v1209
        %v1237 = vmul.f32 %v434, %v1209
        %v1238 = vmul.f32 %v439, %v1209
        %v1239 = vmul.f32 %v444, %v1209
        %v1240 = vmul.f32 %v449, %v1209
        %v1241 = vmul.f32 %v454, %v1209
        %v1242 = vlaneseq
        %v1243 = vshrl.u32 %v1242, 7
        %v1244 = vsub.s32 1, %v1243
        %v1245 = vrot.slane %v1205, %v1244
        %v1246 = vmul.f32 %v495, %v1245
        %v1247 = vmul.f32 %v500, %v1245
        %v1248 = vmul.f32 %v505, %v1245
        %v1249 = vmul.f32 %v510, %v1245
        %v1250 = vmul.f32 %v515, %v1245
        %v1251 = vmul.f32 %v520, %v1245
        %v1252 = vmul.f32 %v525, %v1245
        %v1253 = vmul.f32 %v530, %v1245
        %v1254 = vmul.f32 %v535, %v1245
        %v1255 = vmul.f32 %v540, %v1245
        %v1256 = vmul.f32 %v545, %v1245
        %v1257 = vmul.f32 %v550, %v1245
        %v1258 = vmul.f32 %v555, %v1245
        %v1259 = vmul.f32 %v560, %v1245
        %v1260 = vmul.f32 %v565, %v1245
        %v1261 = vmul.f32 %v570, %v1245
        %v1262 = vmul.f32 %v575, %v1245
        %v1263 = vmul.f32 %v580, %v1245
        %v1264 = vmul.f32 %v585, %v1245
        %v1265 = vmul.f32 %v590, %v1245
        %v1266 = vmul.f32 %v595, %v1245
        %v1267 = vmul.f32 %v600, %v1245
        %v1268 = vmul.f32 %v605, %v1245
        %v1269 = vmul.f32 %v610, %v1245
        %v1270 = vmul.f32 %v615, %v1245
        %v1271 = vmul.f32 %v620, %v1245
        %v1272 = vmul.f32 %v625, %v1245
        %v1273 = vmul.f32 %v630, %v1245
        %v1274 = vmul.f32 %v635, %v1245
        %v1275 = vmul.f32 %v640, %v1245
        %v1276 = vmul.f32 %v645, %v1245
        %v1277 = vmul.f32 %v650, %v1245
        %v1278 = vadd.f32 %v1210, %v1246
        %v1279 = vadd.f32 %v1211, %v1247
        %v1280 = vadd.f32 %v1212, %v1248
        %v1281 = vadd.f32 %v1213, %v1249
        %v1282 = vadd.f32 %v1214, %v1250
        %v1283 = vadd.f32 %v1215, %v1251
        %v1284 = vadd.f32 %v1216, %v1252
        %v1285 = vadd.f32 %v1217, %v1253
        %v1286 = vadd.f32 %v1218, %v1254
        %v1287 = vadd.f32 %v1219, %v1255
        %v1288 = vadd.f32 %v1220, %v1256
        %v1289 = vadd.f32 %v1221, %v1257
        %v1290 = vadd.f32 %v1222, %v1258
        %v1291 = vadd.f32 %v1223, %v1259
        %v1292 = vadd.f32 %v1224, %v1260
        %v1293 = vadd.f32 %v1225, %v1261
        %v1294 = vadd.f32 %v1226, %v1262
        %v1295 = vadd.f32 %v1227, %v1263
        %v1296 = vadd.f32 %v1228, %v1264
        %v1297 = vadd.f32 %v1229, %v1265
        %v1298 = vadd.f32 %v1230, %v1266
        %v1299 = vadd.f32 %v1231, %v1267
        %v1300 = vadd.f32 %v1232, %v1268
        %v1301 = vadd.f32 %v1233, %v1269
        %v1302 = vadd.f32 %v1234, %v1270
        %v1303 = vadd.f32 %v1235, %v1271
        %v1304 = vadd.f32 %v1236, %v1272
        %v1305 = vadd.f32 %v1237, %v1273
        %v1306 = vadd.f32 %v1238, %v1274
        %v1307 = vadd.f32 %v1239, %v1275
        %v1308 = vadd.f32 %v1240, %v1276
        %v1309 = vadd.f32 %v1241, %v1277
        %v1310 = vlaneseq
        %v1311 = vshrl.u32 %v1310, 7
        %v1312 = vsub.s32 2, %v1311
        %v1313 = vrot.slane %v1205, %v1312
        %v1314 = vadd.f32 %v1278, %v1313
        %v1315 = vadd.f32 %v1279, %v1313
        %v1316 = vadd.f32 %v1280, %v1313
        %v1317 = vadd.f32 %v1281, %v1313
        %v1318 = vadd.f32 %v1282, %v1313
        %v1319 = vadd.f32 %v1283, %v1313
        %v1320 = vadd.f32 %v1284, %v1313
        %v1321 = vadd.f32 %v1285, %v1313
        %v1322 = vadd.f32 %v1286, %v1313
        %v1323 = vadd.f32 %v1287, %v1313
        %v1324 = vadd.f32 %v1288, %v1313
        %v1325 = vadd.f32 %v1289, %v1313
        %v1326 = vadd.f32 %v1290, %v1313
        %v1327 = vadd.f32 %v1291, %v1313
        %v1328 = vadd.f32 %v1292, %v1313
        %v1329 = vadd.f32 %v1293, %v1313
        %v1330 = vadd.f32 %v1294, %v1313
        %v1331 = vadd.f32 %v1295, %v1313
        %v1332 = vadd.f32 %v1296, %v1313
        %v1333 = vadd.f32 %v1297, %v1313
        %v1334 = vadd.f32 %v1298, %v1313
        %v1335 = vadd.f32 %v1299, %v1313
        %v1336 = vadd.f32 %v1300, %v1313
        %v1337 = vadd.f32 %v1301, %v1313
        %v1338 = vadd.f32 %v1302, %v1313
        %v1339 = vadd.f32 %v1303, %v1313
        %v1340 = vadd.f32 %v1304, %v1313
        %v1341 = vadd.f32 %v1305, %v1313
        %v1342 = vadd.f32 %v1306, %v1313
        %v1343 = vadd.f32 %v1307, %v1313
        %v1344 = vadd.f32 %v1308, %v1313
        %v1345 = vadd.f32 %v1309, %v1313
        %v1346 = vmul.f32 %v1314, %v1314
        %v1347 = vmul.f32 %v1315, %v1315
        %v1348 = vmul.f32 %v1316, %v1316
        %v1349 = vmul.f32 %v1317, %v1317
        %v1350 = vmul.f32 %v1318, %v1318
        %v1351 = vmul.f32 %v1319, %v1319
        %v1352 = vmul.f32 %v1320, %v1320
        %v1353 = vmul.f32 %v1321, %v1321
        %v1354 = vmul.f32 %v1322, %v1322
        %v1355 = vmul.f32 %v1323, %v1323
        %v1356 = vmul.f32 %v1324, %v1324
        %v1357 = vmul.f32 %v1325, %v1325
        %v1358 = vmul.f32 %v1326, %v1326
        %v1359 = vmul.f32 %v1327, %v1327
        %v1360 = vmul.f32 %v1328, %v1328
        %v1361 = vmul.f32 %v1329, %v1329
        %v1362 = vmul.f32 %v1330, %v1330
        %v1363 = vmul.f32 %v1331, %v1331
        %v1364 = vmul.f32 %v1332, %v1332
        %v1365 = vmul.f32 %v1333, %v1333
        %v1366 = vmul.f32 %v1334, %v1334
        %v1367 = vmul.f32 %v1335, %v1335
        %v1368 = vmul.f32 %v1336, %v1336
        %v1369 = vmul.f32 %v1337, %v1337
        %v1370 = vmul.f32 %v1338, %v1338
        %v1371 = vmul.f32 %v1339, %v1339
        %v1372 = vmul.f32 %v1340, %v1340
        %v1373 = vmul.f32 %v1341, %v1341
        %v1374 = vmul.f32 %v1342, %v1342
        %v1375 = vmul.f32 %v1343, %v1343
        %v1376 = vmul.f32 %v1344, %v1344
        %v1377 = vmul.f32 %v1345, %v1345
        %1378 = vadd.xlane.f32.xlu0 %v1346
        %v1379 = vpop.xlane.xlu0 %1378
        %1380 = vadd.xlane.f32.xlu0 %v1347
        %v1381 = vpop.xlane.xlu0 %1380
        %1382 = vadd.xlane.f32.xlu0 %v1348
        %v1383 = vpop.xlane.xlu0 %1382
        %1384 = vadd.xlane.f32.xlu0 %v1349
        %v1385 = vpop.xlane.xlu0 %1384
        %1386 = vadd.xlane.f32.xlu0 %v1350
        %v1387 = vpop.xlane.xlu0 %1386
        %1388 = vadd.xlane.f32.xlu0 %v1351
        %v1389 = vpop.xlane.xlu0 %1388
        %1390 = vadd.xlane.f32.xlu0 %v1352
        %v1391 = vpop.xlane.xlu0 %1390
        %1392 = vadd.xlane.f32.xlu0 %v1353
        %v1393 = vpop.xlane.xlu0 %1392
        %1394 = vadd.xlane.f32.xlu0 %v1354
        %v1395 = vpop.xlane.xlu0 %1394
        %1396 = vadd.xlane.f32.xlu0 %v1355
        %v1397 = vpop.xlane.xlu0 %1396
        %1398 = vadd.xlane.f32.xlu0 %v1356
        %v1399 = vpop.xlane.xlu0 %1398
        %1400 = vadd.xlane.f32.xlu0 %v1357
        %v1401 = vpop.xlane.xlu0 %1400
        %1402 = vadd.xlane.f32.xlu0 %v1358
        %v1403 = vpop.xlane.xlu0 %1402
        %1404 = vadd.xlane.f32.xlu0 %v1359
        %v1405 = vpop.xlane.xlu0 %1404
        %1406 = vadd.xlane.f32.xlu0 %v1360
        %v1407 = vpop.xlane.xlu0 %1406
        %1408 = vadd.xlane.f32.xlu0 %v1361
        %v1409 = vpop.xlane.xlu0 %1408
        %1410 = vadd.xlane.f32.xlu0 %v1362
        %v1411 = vpop.xlane.xlu0 %1410
        %1412 = vadd.xlane.f32.xlu0 %v1363
        %v1413 = vpop.xlane.xlu0 %1412
        %1414 = vadd.xlane.f32.xlu0 %v1364
        %v1415 = vpop.xlane.xlu0 %1414
        %1416 = vadd.xlane.f32.xlu0 %v1365
        %v1417 = vpop.xlane.xlu0 %1416
        %1418 = vadd.xlane.f32.xlu0 %v1366
        %v1419 = vpop.xlane.xlu0 %1418
        %1420 = vadd.xlane.f32.xlu0 %v1367
        %v1421 = vpop.xlane.xlu0 %1420
        %1422 = vadd.xlane.f32.xlu0 %v1368
        %v1423 = vpop.xlane.xlu0 %1422
        %1424 = vadd.xlane.f32.xlu0 %v1369
        %v1425 = vpop.xlane.xlu0 %1424
        %1426 = vadd.xlane.f32.xlu0 %v1370
        %v1427 = vpop.xlane.xlu0 %1426
        %1428 = vadd.xlane.f32.xlu0 %v1371
        %v1429 = vpop.xlane.xlu0 %1428
        %1430 = vadd.xlane.f32.xlu0 %v1372
        %v1431 = vpop.xlane.xlu0 %1430
        %1432 = vadd.xlane.f32.xlu0 %v1373
        %v1433 = vpop.xlane.xlu0 %1432
        %1434 = vadd.xlane.f32.xlu0 %v1374
        %v1435 = vpop.xlane.xlu0 %1434
        %1436 = vadd.xlane.f32.xlu0 %v1375
        %v1437 = vpop.xlane.xlu0 %1436
        %1438 = vadd.xlane.f32.xlu0 %v1376
        %v1439 = vpop.xlane.xlu0 %1438
        %1440 = vadd.xlane.f32.xlu0 %v1377
        %v1441 = vpop.xlane.xlu0 %1440
        %v1442 = vrsqrt.pop %v1379
        %v1443 = vmul.f32 %v1379, %v1442
        %vm1444 = vcmp.eq.f32.partialorder %v1379, inf
        %v1445 = vsel %vm1444, %v1379, %v1443
        %vm1446 = vcmp.eq.f32.partialorder %v1379, 0.0
        %v1447 = vand.u32 %v1379, 2147483648
        %v1448 = vsel %vm1446, %v1447, %v1445
        %v1449 = vrsqrt.pop %v1381
        %v1450 = vmul.f32 %v1381, %v1449
        %vm1451 = vcmp.eq.f32.partialorder %v1381, inf
        %v1452 = vsel %vm1451, %v1381, %v1450
        %vm1453 = vcmp.eq.f32.partialorder %v1381, 0.0
        %v1454 = vand.u32 %v1381, 2147483648
        %v1455 = vsel %vm1453, %v1454, %v1452
        %v1456 = vrsqrt.pop %v1383
        %v1457 = vmul.f32 %v1383, %v1456
        %vm1458 = vcmp.eq.f32.partialorder %v1383, inf
        %v1459 = vsel %vm1458, %v1383, %v1457
        %vm1460 = vcmp.eq.f32.partialorder %v1383, 0.0
        %v1461 = vand.u32 %v1383, 2147483648
        %v1462 = vsel %vm1460, %v1461, %v1459
        %v1463 = vrsqrt.pop %v1385
        %v1464 = vmul.f32 %v1385, %v1463
        %vm1465 = vcmp.eq.f32.partialorder %v1385, inf
        %v1466 = vsel %vm1465, %v1385, %v1464
        %vm1467 = vcmp.eq.f32.partialorder %v1385, 0.0
        %v1468 = vand.u32 %v1385, 2147483648
        %v1469 = vsel %vm1467, %v1468, %v1466
        %v1470 = vrsqrt.pop %v1387
        %v1471 = vmul.f32 %v1387, %v1470
        %vm1472 = vcmp.eq.f32.partialorder %v1387, inf
        %v1473 = vsel %vm1472, %v1387, %v1471
        %vm1474 = vcmp.eq.f32.partialorder %v1387, 0.0
        %v1475 = vand.u32 %v1387, 2147483648
        %v1476 = vsel %vm1474, %v1475, %v1473
        %v1477 = vrsqrt.pop %v1389
        %v1478 = vmul.f32 %v1389, %v1477
        %vm1479 = vcmp.eq.f32.partialorder %v1389, inf
        %v1480 = vsel %vm1479, %v1389, %v1478
        %vm1481 = vcmp.eq.f32.partialorder %v1389, 0.0
        %v1482 = vand.u32 %v1389, 2147483648
        %v1483 = vsel %vm1481, %v1482, %v1480
        %v1484 = vrsqrt.pop %v1391
        %v1485 = vmul.f32 %v1391, %v1484
        %vm1486 = vcmp.eq.f32.partialorder %v1391, inf
        %v1487 = vsel %vm1486, %v1391, %v1485
        %vm1488 = vcmp.eq.f32.partialorder %v1391, 0.0
        %v1489 = vand.u32 %v1391, 2147483648
        %v1490 = vsel %vm1488, %v1489, %v1487
        %v1491 = vrsqrt.pop %v1393
        %v1492 = vmul.f32 %v1393, %v1491
        %vm1493 = vcmp.eq.f32.partialorder %v1393, inf
        %v1494 = vsel %vm1493, %v1393, %v1492
        %vm1495 = vcmp.eq.f32.partialorder %v1393, 0.0
        %v1496 = vand.u32 %v1393, 2147483648
        %v1497 = vsel %vm1495, %v1496, %v1494
        %v1498 = vrsqrt.pop %v1395
        %v1499 = vmul.f32 %v1395, %v1498
        %vm1500 = vcmp.eq.f32.partialorder %v1395, inf
        %v1501 = vsel %vm1500, %v1395, %v1499
        %vm1502 = vcmp.eq.f32.partialorder %v1395, 0.0
        %v1503 = vand.u32 %v1395, 2147483648
        %v1504 = vsel %vm1502, %v1503, %v1501
        %v1505 = vrsqrt.pop %v1397
        %v1506 = vmul.f32 %v1397, %v1505
        %vm1507 = vcmp.eq.f32.partialorder %v1397, inf
        %v1508 = vsel %vm1507, %v1397, %v1506
        %vm1509 = vcmp.eq.f32.partialorder %v1397, 0.0
        %v1510 = vand.u32 %v1397, 2147483648
        %v1511 = vsel %vm1509, %v1510, %v1508
        %v1512 = vrsqrt.pop %v1399
        %v1513 = vmul.f32 %v1399, %v1512
        %vm1514 = vcmp.eq.f32.partialorder %v1399, inf
        %v1515 = vsel %vm1514, %v1399, %v1513
        %vm1516 = vcmp.eq.f32.partialorder %v1399, 0.0
        %v1517 = vand.u32 %v1399, 2147483648
        %v1518 = vsel %vm1516, %v1517, %v1515
        %v1519 = vrsqrt.pop %v1401
        %v1520 = vmul.f32 %v1401, %v1519
        %vm1521 = vcmp.eq.f32.partialorder %v1401, inf
        %v1522 = vsel %vm1521, %v1401, %v1520
        %vm1523 = vcmp.eq.f32.partialorder %v1401, 0.0
        %v1524 = vand.u32 %v1401, 2147483648
        %v1525 = vsel %vm1523, %v1524, %v1522
        %v1526 = vrsqrt.pop %v1403
        %v1527 = vmul.f32 %v1403, %v1526
        %vm1528 = vcmp.eq.f32.partialorder %v1403, inf
        %v1529 = vsel %vm1528, %v1403, %v1527
        %vm1530 = vcmp.eq.f32.partialorder %v1403, 0.0
        %v1531 = vand.u32 %v1403, 2147483648
        %v1532 = vsel %vm1530, %v1531, %v1529
        %v1533 = vrsqrt.pop %v1405
        %v1534 = vmul.f32 %v1405, %v1533
        %vm1535 = vcmp.eq.f32.partialorder %v1405, inf
        %v1536 = vsel %vm1535, %v1405, %v1534
        %vm1537 = vcmp.eq.f32.partialorder %v1405, 0.0
        %v1538 = vand.u32 %v1405, 2147483648
        %v1539 = vsel %vm1537, %v1538, %v1536
        %v1540 = vrsqrt.pop %v1407
        %v1541 = vmul.f32 %v1407, %v1540
        %vm1542 = vcmp.eq.f32.partialorder %v1407, inf
        %v1543 = vsel %vm1542, %v1407, %v1541
        %vm1544 = vcmp.eq.f32.partialorder %v1407, 0.0
        %v1545 = vand.u32 %v1407, 2147483648
        %v1546 = vsel %vm1544, %v1545, %v1543
        %v1547 = vrsqrt.pop %v1409
        %v1548 = vmul.f32 %v1409, %v1547
        %vm1549 = vcmp.eq.f32.partialorder %v1409, inf
        %v1550 = vsel %vm1549, %v1409, %v1548
        %vm1551 = vcmp.eq.f32.partialorder %v1409, 0.0
        %v1552 = vand.u32 %v1409, 2147483648
        %v1553 = vsel %vm1551, %v1552, %v1550
        %v1554 = vrsqrt.pop %v1411
        %v1555 = vmul.f32 %v1411, %v1554
        %vm1556 = vcmp.eq.f32.partialorder %v1411, inf
        %v1557 = vsel %vm1556, %v1411, %v1555
        %vm1558 = vcmp.eq.f32.partialorder %v1411, 0.0
        %v1559 = vand.u32 %v1411, 2147483648
        %v1560 = vsel %vm1558, %v1559, %v1557
        %v1561 = vrsqrt.pop %v1413
        %v1562 = vmul.f32 %v1413, %v1561
        %vm1563 = vcmp.eq.f32.partialorder %v1413, inf
        %v1564 = vsel %vm1563, %v1413, %v1562
        %vm1565 = vcmp.eq.f32.partialorder %v1413, 0.0
        %v1566 = vand.u32 %v1413, 2147483648
        %v1567 = vsel %vm1565, %v1566, %v1564
        %v1568 = vrsqrt.pop %v1415
        %v1569 = vmul.f32 %v1415, %v1568
        %vm1570 = vcmp.eq.f32.partialorder %v1415, inf
        %v1571 = vsel %vm1570, %v1415, %v1569
        %vm1572 = vcmp.eq.f32.partialorder %v1415, 0.0
        %v1573 = vand.u32 %v1415, 2147483648
        %v1574 = vsel %vm1572, %v1573, %v1571
        %v1575 = vrsqrt.pop %v1417
        %v1576 = vmul.f32 %v1417, %v1575
        %vm1577 = vcmp.eq.f32.partialorder %v1417, inf
        %v1578 = vsel %vm1577, %v1417, %v1576
        %vm1579 = vcmp.eq.f32.partialorder %v1417, 0.0
        %v1580 = vand.u32 %v1417, 2147483648
        %v1581 = vsel %vm1579, %v1580, %v1578
        %v1582 = vrsqrt.pop %v1419
        %v1583 = vmul.f32 %v1419, %v1582
        %vm1584 = vcmp.eq.f32.partialorder %v1419, inf
        %v1585 = vsel %vm1584, %v1419, %v1583
        %vm1586 = vcmp.eq.f32.partialorder %v1419, 0.0
        %v1587 = vand.u32 %v1419, 2147483648
        %v1588 = vsel %vm1586, %v1587, %v1585
        %v1589 = vrsqrt.pop %v1421
        %v1590 = vmul.f32 %v1421, %v1589
        %vm1591 = vcmp.eq.f32.partialorder %v1421, inf
        %v1592 = vsel %vm1591, %v1421, %v1590
        %vm1593 = vcmp.eq.f32.partialorder %v1421, 0.0
        %v1594 = vand.u32 %v1421, 2147483648
        %v1595 = vsel %vm1593, %v1594, %v1592
        %v1596 = vrsqrt.pop %v1423
        %v1597 = vmul.f32 %v1423, %v1596
        %vm1598 = vcmp.eq.f32.partialorder %v1423, inf
        %v1599 = vsel %vm1598, %v1423, %v1597
        %vm1600 = vcmp.eq.f32.partialorder %v1423, 0.0
        %v1601 = vand.u32 %v1423, 2147483648
        %v1602 = vsel %vm1600, %v1601, %v1599
        %v1603 = vrsqrt.pop %v1425
        %v1604 = vmul.f32 %v1425, %v1603
        %vm1605 = vcmp.eq.f32.partialorder %v1425, inf
        %v1606 = vsel %vm1605, %v1425, %v1604
        %vm1607 = vcmp.eq.f32.partialorder %v1425, 0.0
        %v1608 = vand.u32 %v1425, 2147483648
        %v1609 = vsel %vm1607, %v1608, %v1606
        %v1610 = vrsqrt.pop %v1427
        %v1611 = vmul.f32 %v1427, %v1610
        %vm1612 = vcmp.eq.f32.partialorder %v1427, inf
        %v1613 = vsel %vm1612, %v1427, %v1611
        %vm1614 = vcmp.eq.f32.partialorder %v1427, 0.0
        %v1615 = vand.u32 %v1427, 2147483648
        %v1616 = vsel %vm1614, %v1615, %v1613
        %v1617 = vrsqrt.pop %v1429
        %v1618 = vmul.f32 %v1429, %v1617
        %vm1619 = vcmp.eq.f32.partialorder %v1429, inf
        %v1620 = vsel %vm1619, %v1429, %v1618
        %vm1621 = vcmp.eq.f32.partialorder %v1429, 0.0
        %v1622 = vand.u32 %v1429, 2147483648
        %v1623 = vsel %vm1621, %v1622, %v1620
        %v1624 = vrsqrt.pop %v1431
        %v1625 = vmul.f32 %v1431, %v1624
        %vm1626 = vcmp.eq.f32.partialorder %v1431, inf
        %v1627 = vsel %vm1626, %v1431, %v1625
        %vm1628 = vcmp.eq.f32.partialorder %v1431, 0.0
        %v1629 = vand.u32 %v1431, 2147483648
        %v1630 = vsel %vm1628, %v1629, %v1627
        %v1631 = vrsqrt.pop %v1433
        %v1632 = vmul.f32 %v1433, %v1631
        %vm1633 = vcmp.eq.f32.partialorder %v1433, inf
        %v1634 = vsel %vm1633, %v1433, %v1632
        %vm1635 = vcmp.eq.f32.partialorder %v1433, 0.0
        %v1636 = vand.u32 %v1433, 2147483648
        %v1637 = vsel %vm1635, %v1636, %v1634
        %v1638 = vrsqrt.pop %v1435
        %v1639 = vmul.f32 %v1435, %v1638
        %vm1640 = vcmp.eq.f32.partialorder %v1435, inf
        %v1641 = vsel %vm1640, %v1435, %v1639
        %vm1642 = vcmp.eq.f32.partialorder %v1435, 0.0
        %v1643 = vand.u32 %v1435, 2147483648
        %v1644 = vsel %vm1642, %v1643, %v1641
        %v1645 = vrsqrt.pop %v1437
        %v1646 = vmul.f32 %v1437, %v1645
        %vm1647 = vcmp.eq.f32.partialorder %v1437, inf
        %v1648 = vsel %vm1647, %v1437, %v1646
        %vm1649 = vcmp.eq.f32.partialorder %v1437, 0.0
        %v1650 = vand.u32 %v1437, 2147483648
        %v1651 = vsel %vm1649, %v1650, %v1648
        %v1652 = vrsqrt.pop %v1439
        %v1653 = vmul.f32 %v1439, %v1652
        %vm1654 = vcmp.eq.f32.partialorder %v1439, inf
        %v1655 = vsel %vm1654, %v1439, %v1653
        %vm1656 = vcmp.eq.f32.partialorder %v1439, 0.0
        %v1657 = vand.u32 %v1439, 2147483648
        %v1658 = vsel %vm1656, %v1657, %v1655
        %v1659 = vrsqrt.pop %v1441
        %v1660 = vmul.f32 %v1441, %v1659
        %vm1661 = vcmp.eq.f32.partialorder %v1441, inf
        %v1662 = vsel %vm1661, %v1441, %v1660
        %vm1663 = vcmp.eq.f32.partialorder %v1441, 0.0
        %v1664 = vand.u32 %v1441, 2147483648
        %v1665 = vsel %vm1663, %v1664, %v1662
        %v1666 = vadd.f32 %v1448, 1e-07
        %v1667 = vadd.f32 %v1455, 1e-07
        %v1668 = vadd.f32 %v1462, 1e-07
        %v1669 = vadd.f32 %v1469, 1e-07
        %v1670 = vadd.f32 %v1476, 1e-07
        %v1671 = vadd.f32 %v1483, 1e-07
        %v1672 = vadd.f32 %v1490, 1e-07
        %v1673 = vadd.f32 %v1497, 1e-07
        %v1674 = vadd.f32 %v1504, 1e-07
        %v1675 = vadd.f32 %v1511, 1e-07
        %v1676 = vadd.f32 %v1518, 1e-07
        %v1677 = vadd.f32 %v1525, 1e-07
        %v1678 = vadd.f32 %v1532, 1e-07
        %v1679 = vadd.f32 %v1539, 1e-07
        %v1680 = vadd.f32 %v1546, 1e-07
        %v1681 = vadd.f32 %v1553, 1e-07
        %v1682 = vadd.f32 %v1560, 1e-07
        %v1683 = vadd.f32 %v1567, 1e-07
        %v1684 = vadd.f32 %v1574, 1e-07
        %v1685 = vadd.f32 %v1581, 1e-07
        %v1686 = vadd.f32 %v1588, 1e-07
        %v1687 = vadd.f32 %v1595, 1e-07
        %v1688 = vadd.f32 %v1602, 1e-07
        %v1689 = vadd.f32 %v1609, 1e-07
        %v1690 = vadd.f32 %v1616, 1e-07
        %v1691 = vadd.f32 %v1623, 1e-07
        %v1692 = vadd.f32 %v1630, 1e-07
        %v1693 = vadd.f32 %v1637, 1e-07
        %v1694 = vadd.f32 %v1644, 1e-07
        %v1695 = vadd.f32 %v1651, 1e-07
        %v1696 = vadd.f32 %v1658, 1e-07
        %v1697 = vadd.f32 %v1665, 1e-07
        %v1698 = vrcp.pop %v1666
        %v1699 = vrcp.pop %v1667
        %v1700 = vrcp.pop %v1668
        %v1701 = vrcp.pop %v1669
        %v1702 = vrcp.pop %v1670
        %v1703 = vrcp.pop %v1671
        %v1704 = vrcp.pop %v1672
        %v1705 = vrcp.pop %v1673
        %v1706 = vrcp.pop %v1674
        %v1707 = vrcp.pop %v1675
        %v1708 = vrcp.pop %v1676
        %v1709 = vrcp.pop %v1677
        %v1710 = vrcp.pop %v1678
        %v1711 = vrcp.pop %v1679
        %v1712 = vrcp.pop %v1680
        %v1713 = vrcp.pop %v1681
        %v1714 = vrcp.pop %v1682
        %v1715 = vrcp.pop %v1683
        %v1716 = vrcp.pop %v1684
        %v1717 = vrcp.pop %v1685
        %v1718 = vrcp.pop %v1686
        %v1719 = vrcp.pop %v1687
        %v1720 = vrcp.pop %v1688
        %v1721 = vrcp.pop %v1689
        %v1722 = vrcp.pop %v1690
        %v1723 = vrcp.pop %v1691
        %v1724 = vrcp.pop %v1692
        %v1725 = vrcp.pop %v1693
        %v1726 = vrcp.pop %v1694
        %v1727 = vrcp.pop %v1695
        %v1728 = vrcp.pop %v1696
        %v1729 = vrcp.pop %v1697
        %v1730 = vmul.f32 %v1314, %v1698
        %v1731 = vmul.f32 %v1315, %v1699
        %v1732 = vmul.f32 %v1316, %v1700
        %v1733 = vmul.f32 %v1317, %v1701
        %v1734 = vmul.f32 %v1318, %v1702
        %v1735 = vmul.f32 %v1319, %v1703
        %v1736 = vmul.f32 %v1320, %v1704
        %v1737 = vmul.f32 %v1321, %v1705
        %v1738 = vmul.f32 %v1322, %v1706
        %v1739 = vmul.f32 %v1323, %v1707
        %v1740 = vmul.f32 %v1324, %v1708
        %v1741 = vmul.f32 %v1325, %v1709
        %v1742 = vmul.f32 %v1326, %v1710
        %v1743 = vmul.f32 %v1327, %v1711
        %v1744 = vmul.f32 %v1328, %v1712
        %v1745 = vmul.f32 %v1329, %v1713
        %v1746 = vmul.f32 %v1330, %v1714
        %v1747 = vmul.f32 %v1331, %v1715
        %v1748 = vmul.f32 %v1332, %v1716
        %v1749 = vmul.f32 %v1333, %v1717
        %v1750 = vmul.f32 %v1334, %v1718
        %v1751 = vmul.f32 %v1335, %v1719
        %v1752 = vmul.f32 %v1336, %v1720
        %v1753 = vmul.f32 %v1337, %v1721
        %v1754 = vmul.f32 %v1338, %v1722
        %v1755 = vmul.f32 %v1339, %v1723
        %v1756 = vmul.f32 %v1340, %v1724
        %v1757 = vmul.f32 %v1341, %v1725
        %v1758 = vmul.f32 %v1342, %v1726
        %v1759 = vmul.f32 %v1343, %v1727
        %v1760 = vmul.f32 %v1344, %v1728
        %v1761 = vmul.f32 %v1345, %v1729
        %s1762 = scalar_lea.vmem %s210, 256 [#allocation2]
        %1763 = vst [vmem:[%s1762] sm:$0xff] %v1730
        %1764 = vst [vmem:[%s1762 + $0x8] sm:$0xff] %v1731
        %1765 = vst [vmem:[%s1762 + $0x10] sm:$0xff] %v1732
        %1766 = vst [vmem:[%s1762 + $0x18] sm:$0xff] %v1733
        %1767 = vst [vmem:[%s1762 + $0x20] sm:$0xff] %v1734
        %1768 = vst [vmem:[%s1762 + $0x28] sm:$0xff] %v1735
        %1769 = vst [vmem:[%s1762 + $0x30] sm:$0xff] %v1736
        %1770 = vst [vmem:[%s1762 + $0x38] sm:$0xff] %v1737
        %1771 = vst [vmem:[%s1762 + $0x40] sm:$0xff] %v1738
        %1772 = vst [vmem:[%s1762 + $0x48] sm:$0xff] %v1739
        %1773 = vst [vmem:[%s1762 + $0x50] sm:$0xff] %v1740
        %1774 = vst [vmem:[%s1762 + $0x58] sm:$0xff] %v1741
        %1775 = vst [vmem:[%s1762 + $0x60] sm:$0xff] %v1742
        %1776 = vst [vmem:[%s1762 + $0x68] sm:$0xff] %v1743
        %1777 = vst [vmem:[%s1762 + $0x70] sm:$0xff] %v1744
        %1778 = vst [vmem:[%s1762 + $0x78] sm:$0xff] %v1745
        %1779 = vst [vmem:[%s1762 + $0x80] sm:$0xff] %v1746
        %1780 = vst [vmem:[%s1762 + $0x88] sm:$0xff] %v1747
        %1781 = vst [vmem:[%s1762 + $0x90] sm:$0xff] %v1748
        %1782 = vst [vmem:[%s1762 + $0x98] sm:$0xff] %v1749
        %1783 = vst [vmem:[%s1762 + $0xa0] sm:$0xff] %v1750
        %1784 = vst [vmem:[%s1762 + $0xa8] sm:$0xff] %v1751
        %1785 = vst [vmem:[%s1762 + $0xb0] sm:$0xff] %v1752
        %1786 = vst [vmem:[%s1762 + $0xb8] sm:$0xff] %v1753
        %1787 = vst [vmem:[%s1762 + $0xc0] sm:$0xff] %v1754
        %1788 = vst [vmem:[%s1762 + $0xc8] sm:$0xff] %v1755
        %1789 = vst [vmem:[%s1762 + $0xd0] sm:$0xff] %v1756
        %1790 = vst [vmem:[%s1762 + $0xd8] sm:$0xff] %v1757
        %1791 = vst [vmem:[%s1762 + $0xe0] sm:$0xff] %v1758
        %1792 = vst [vmem:[%s1762 + $0xe8] sm:$0xff] %v1759
        %1793 = vst [vmem:[%s1762 + $0xf0] sm:$0xff] %v1760
        %1794 = vst [vmem:[%s1762 + $0xf8] sm:$0xff] %v1761
        %s1795 = scalar_lea.vmem %s227, 8
        %v1796 = vld [vmem:[%s1795] sm:$0x7]
        %v1797 = vlaneseq
        %v1798 = vshrl.u32 %v1797, 7
        %v1799 = vsub.s32 0, %v1798
        %v1800 = vrot.slane %v1796, %v1799
        %v1801 = vmul.f32 %v299, %v1800
        %v1802 = vmul.f32 %v304, %v1800
        %v1803 = vmul.f32 %v309, %v1800
        %v1804 = vmul.f32 %v314, %v1800
        %v1805 = vmul.f32 %v319, %v1800
        %v1806 = vmul.f32 %v324, %v1800
        %v1807 = vmul.f32 %v329, %v1800
        %v1808 = vmul.f32 %v334, %v1800
        %v1809 = vmul.f32 %v339, %v1800
        %v1810 = vmul.f32 %v344, %v1800
        %v1811 = vmul.f32 %v349, %v1800
        %v1812 = vmul.f32 %v354, %v1800
        %v1813 = vmul.f32 %v359, %v1800
        %v1814 = vmul.f32 %v364, %v1800
        %v1815 = vmul.f32 %v369, %v1800
        %v1816 = vmul.f32 %v374, %v1800
        %v1817 = vmul.f32 %v379, %v1800
        %v1818 = vmul.f32 %v384, %v1800
        %v1819 = vmul.f32 %v389, %v1800
        %v1820 = vmul.f32 %v394, %v1800
        %v1821 = vmul.f32 %v399, %v1800
        %v1822 = vmul.f32 %v404, %v1800
        %v1823 = vmul.f32 %v409, %v1800
        %v1824 = vmul.f32 %v414, %v1800
        %v1825 = vmul.f32 %v419, %v1800
        %v1826 = vmul.f32 %v424, %v1800
        %v1827 = vmul.f32 %v429, %v1800
        %v1828 = vmul.f32 %v434, %v1800
        %v1829 = vmul.f32 %v439, %v1800
        %v1830 = vmul.f32 %v444, %v1800
        %v1831 = vmul.f32 %v449, %v1800
        %v1832 = vmul.f32 %v454, %v1800
        %v1833 = vlaneseq
        %v1834 = vshrl.u32 %v1833, 7
        %v1835 = vsub.s32 1, %v1834
        %v1836 = vrot.slane %v1796, %v1835
        %v1837 = vmul.f32 %v495, %v1836
        %v1838 = vmul.f32 %v500, %v1836
        %v1839 = vmul.f32 %v505, %v1836
        %v1840 = vmul.f32 %v510, %v1836
        %v1841 = vmul.f32 %v515, %v1836
        %v1842 = vmul.f32 %v520, %v1836
        %v1843 = vmul.f32 %v525, %v1836
        %v1844 = vmul.f32 %v530, %v1836
        %v1845 = vmul.f32 %v535, %v1836
        %v1846 = vmul.f32 %v540, %v1836
        %v1847 = vmul.f32 %v545, %v1836
        %v1848 = vmul.f32 %v550, %v1836
        %v1849 = vmul.f32 %v555, %v1836
        %v1850 = vmul.f32 %v560, %v1836
        %v1851 = vmul.f32 %v565, %v1836
        %v1852 = vmul.f32 %v570, %v1836
        %v1853 = vmul.f32 %v575, %v1836
        %v1854 = vmul.f32 %v580, %v1836
        %v1855 = vmul.f32 %v585, %v1836
        %v1856 = vmul.f32 %v590, %v1836
        %v1857 = vmul.f32 %v595, %v1836
        %v1858 = vmul.f32 %v600, %v1836
        %v1859 = vmul.f32 %v605, %v1836
        %v1860 = vmul.f32 %v610, %v1836
        %v1861 = vmul.f32 %v615, %v1836
        %v1862 = vmul.f32 %v620, %v1836
        %v1863 = vmul.f32 %v625, %v1836
        %v1864 = vmul.f32 %v630, %v1836
        %v1865 = vmul.f32 %v635, %v1836
        %v1866 = vmul.f32 %v640, %v1836
        %v1867 = vmul.f32 %v645, %v1836
        %v1868 = vmul.f32 %v650, %v1836
        %v1869 = vadd.f32 %v1801, %v1837
        %v1870 = vadd.f32 %v1802, %v1838
        %v1871 = vadd.f32 %v1803, %v1839
        %v1872 = vadd.f32 %v1804, %v1840
        %v1873 = vadd.f32 %v1805, %v1841
        %v1874 = vadd.f32 %v1806, %v1842
        %v1875 = vadd.f32 %v1807, %v1843
        %v1876 = vadd.f32 %v1808, %v1844
        %v1877 = vadd.f32 %v1809, %v1845
        %v1878 = vadd.f32 %v1810, %v1846
        %v1879 = vadd.f32 %v1811, %v1847
        %v1880 = vadd.f32 %v1812, %v1848
        %v1881 = vadd.f32 %v1813, %v1849
        %v1882 = vadd.f32 %v1814, %v1850
        %v1883 = vadd.f32 %v1815, %v1851
        %v1884 = vadd.f32 %v1816, %v1852
        %v1885 = vadd.f32 %v1817, %v1853
        %v1886 = vadd.f32 %v1818, %v1854
        %v1887 = vadd.f32 %v1819, %v1855
        %v1888 = vadd.f32 %v1820, %v1856
        %v1889 = vadd.f32 %v1821, %v1857
        %v1890 = vadd.f32 %v1822, %v1858
        %v1891 = vadd.f32 %v1823, %v1859
        %v1892 = vadd.f32 %v1824, %v1860
        %v1893 = vadd.f32 %v1825, %v1861
        %v1894 = vadd.f32 %v1826, %v1862
        %v1895 = vadd.f32 %v1827, %v1863
        %v1896 = vadd.f32 %v1828, %v1864
        %v1897 = vadd.f32 %v1829, %v1865
        %v1898 = vadd.f32 %v1830, %v1866
        %v1899 = vadd.f32 %v1831, %v1867
        %v1900 = vadd.f32 %v1832, %v1868
        %v1901 = vlaneseq
        %v1902 = vshrl.u32 %v1901, 7
        %v1903 = vsub.s32 2, %v1902
        %v1904 = vrot.slane %v1796, %v1903
        %v1905 = vadd.f32 %v1869, %v1904
        %v1906 = vadd.f32 %v1870, %v1904
        %v1907 = vadd.f32 %v1871, %v1904
        %v1908 = vadd.f32 %v1872, %v1904
        %v1909 = vadd.f32 %v1873, %v1904
        %v1910 = vadd.f32 %v1874, %v1904
        %v1911 = vadd.f32 %v1875, %v1904
        %v1912 = vadd.f32 %v1876, %v1904
        %v1913 = vadd.f32 %v1877, %v1904
        %v1914 = vadd.f32 %v1878, %v1904
        %v1915 = vadd.f32 %v1879, %v1904
        %v1916 = vadd.f32 %v1880, %v1904
        %v1917 = vadd.f32 %v1881, %v1904
        %v1918 = vadd.f32 %v1882, %v1904
        %v1919 = vadd.f32 %v1883, %v1904
        %v1920 = vadd.f32 %v1884, %v1904
        %v1921 = vadd.f32 %v1885, %v1904
        %v1922 = vadd.f32 %v1886, %v1904
        %v1923 = vadd.f32 %v1887, %v1904
        %v1924 = vadd.f32 %v1888, %v1904
        %v1925 = vadd.f32 %v1889, %v1904
        %v1926 = vadd.f32 %v1890, %v1904
        %v1927 = vadd.f32 %v1891, %v1904
        %v1928 = vadd.f32 %v1892, %v1904
        %v1929 = vadd.f32 %v1893, %v1904
        %v1930 = vadd.f32 %v1894, %v1904
        %v1931 = vadd.f32 %v1895, %v1904
        %v1932 = vadd.f32 %v1896, %v1904
        %v1933 = vadd.f32 %v1897, %v1904
        %v1934 = vadd.f32 %v1898, %v1904
        %v1935 = vadd.f32 %v1899, %v1904
        %v1936 = vadd.f32 %v1900, %v1904
        %v1937 = vmul.f32 %v1905, %v1905
        %v1938 = vmul.f32 %v1906, %v1906
        %v1939 = vmul.f32 %v1907, %v1907
        %v1940 = vmul.f32 %v1908, %v1908
        %v1941 = vmul.f32 %v1909, %v1909
        %v1942 = vmul.f32 %v1910, %v1910
        %v1943 = vmul.f32 %v1911, %v1911
        %v1944 = vmul.f32 %v1912, %v1912
        %v1945 = vmul.f32 %v1913, %v1913
        %v1946 = vmul.f32 %v1914, %v1914
        %v1947 = vmul.f32 %v1915, %v1915
        %v1948 = vmul.f32 %v1916, %v1916
        %v1949 = vmul.f32 %v1917, %v1917
        %v1950 = vmul.f32 %v1918, %v1918
        %v1951 = vmul.f32 %v1919, %v1919
        %v1952 = vmul.f32 %v1920, %v1920
        %v1953 = vmul.f32 %v1921, %v1921
        %v1954 = vmul.f32 %v1922, %v1922
        %v1955 = vmul.f32 %v1923, %v1923
        %v1956 = vmul.f32 %v1924, %v1924
        %v1957 = vmul.f32 %v1925, %v1925
        %v1958 = vmul.f32 %v1926, %v1926
        %v1959 = vmul.f32 %v1927, %v1927
        %v1960 = vmul.f32 %v1928, %v1928
        %v1961 = vmul.f32 %v1929, %v1929
        %v1962 = vmul.f32 %v1930, %v1930
        %v1963 = vmul.f32 %v1931, %v1931
        %v1964 = vmul.f32 %v1932, %v1932
        %v1965 = vmul.f32 %v1933, %v1933
        %v1966 = vmul.f32 %v1934, %v1934
        %v1967 = vmul.f32 %v1935, %v1935
        %v1968 = vmul.f32 %v1936, %v1936
        %1969 = vadd.xlane.f32.xlu0 %v1937
        %v1970 = vpop.xlane.xlu0 %1969
        %1971 = vadd.xlane.f32.xlu0 %v1938
        %v1972 = vpop.xlane.xlu0 %1971
        %1973 = vadd.xlane.f32.xlu0 %v1939
        %v1974 = vpop.xlane.xlu0 %1973
        %1975 = vadd.xlane.f32.xlu0 %v1940
        %v1976 = vpop.xlane.xlu0 %1975
        %1977 = vadd.xlane.f32.xlu0 %v1941
        %v1978 = vpop.xlane.xlu0 %1977
        %1979 = vadd.xlane.f32.xlu0 %v1942
        %v1980 = vpop.xlane.xlu0 %1979
        %1981 = vadd.xlane.f32.xlu0 %v1943
        %v1982 = vpop.xlane.xlu0 %1981
        %1983 = vadd.xlane.f32.xlu0 %v1944
        %v1984 = vpop.xlane.xlu0 %1983
        %1985 = vadd.xlane.f32.xlu0 %v1945
        %v1986 = vpop.xlane.xlu0 %1985
        %1987 = vadd.xlane.f32.xlu0 %v1946
        %v1988 = vpop.xlane.xlu0 %1987
        %1989 = vadd.xlane.f32.xlu0 %v1947
        %v1990 = vpop.xlane.xlu0 %1989
        %1991 = vadd.xlane.f32.xlu0 %v1948
        %v1992 = vpop.xlane.xlu0 %1991
        %1993 = vadd.xlane.f32.xlu0 %v1949
        %v1994 = vpop.xlane.xlu0 %1993
        %1995 = vadd.xlane.f32.xlu0 %v1950
        %v1996 = vpop.xlane.xlu0 %1995
        %1997 = vadd.xlane.f32.xlu0 %v1951
        %v1998 = vpop.xlane.xlu0 %1997
        %1999 = vadd.xlane.f32.xlu0 %v1952
        %v2000 = vpop.xlane.xlu0 %1999
        %2001 = vadd.xlane.f32.xlu0 %v1953
        %v2002 = vpop.xlane.xlu0 %2001
        %2003 = vadd.xlane.f32.xlu0 %v1954
        %v2004 = vpop.xlane.xlu0 %2003
        %2005 = vadd.xlane.f32.xlu0 %v1955
        %v2006 = vpop.xlane.xlu0 %2005
        %2007 = vadd.xlane.f32.xlu0 %v1956
        %v2008 = vpop.xlane.xlu0 %2007
        %2009 = vadd.xlane.f32.xlu0 %v1957
        %v2010 = vpop.xlane.xlu0 %2009
        %2011 = vadd.xlane.f32.xlu0 %v1958
        %v2012 = vpop.xlane.xlu0 %2011
        %2013 = vadd.xlane.f32.xlu0 %v1959
        %v2014 = vpop.xlane.xlu0 %2013
        %2015 = vadd.xlane.f32.xlu0 %v1960
        %v2016 = vpop.xlane.xlu0 %2015
        %2017 = vadd.xlane.f32.xlu0 %v1961
        %v2018 = vpop.xlane.xlu0 %2017
        %2019 = vadd.xlane.f32.xlu0 %v1962
        %v2020 = vpop.xlane.xlu0 %2019
        %2021 = vadd.xlane.f32.xlu0 %v1963
        %v2022 = vpop.xlane.xlu0 %2021
        %2023 = vadd.xlane.f32.xlu0 %v1964
        %v2024 = vpop.xlane.xlu0 %2023
        %2025 = vadd.xlane.f32.xlu0 %v1965
        %v2026 = vpop.xlane.xlu0 %2025
        %2027 = vadd.xlane.f32.xlu0 %v1966
        %v2028 = vpop.xlane.xlu0 %2027
        %2029 = vadd.xlane.f32.xlu0 %v1967
        %v2030 = vpop.xlane.xlu0 %2029
        %2031 = vadd.xlane.f32.xlu0 %v1968
        %v2032 = vpop.xlane.xlu0 %2031
        %v2033 = vrsqrt.pop %v1970
        %v2034 = vmul.f32 %v1970, %v2033
        %vm2035 = vcmp.eq.f32.partialorder %v1970, inf
        %v2036 = vsel %vm2035, %v1970, %v2034
        %vm2037 = vcmp.eq.f32.partialorder %v1970, 0.0
        %v2038 = vand.u32 %v1970, 2147483648
        %v2039 = vsel %vm2037, %v2038, %v2036
        %v2040 = vrsqrt.pop %v1972
        %v2041 = vmul.f32 %v1972, %v2040
        %vm2042 = vcmp.eq.f32.partialorder %v1972, inf
        %v2043 = vsel %vm2042, %v1972, %v2041
        %vm2044 = vcmp.eq.f32.partialorder %v1972, 0.0
        %v2045 = vand.u32 %v1972, 2147483648
        %v2046 = vsel %vm2044, %v2045, %v2043
        %v2047 = vrsqrt.pop %v1974
        %v2048 = vmul.f32 %v1974, %v2047
        %vm2049 = vcmp.eq.f32.partialorder %v1974, inf
        %v2050 = vsel %vm2049, %v1974, %v2048
        %vm2051 = vcmp.eq.f32.partialorder %v1974, 0.0
        %v2052 = vand.u32 %v1974, 2147483648
        %v2053 = vsel %vm2051, %v2052, %v2050
        %v2054 = vrsqrt.pop %v1976
        %v2055 = vmul.f32 %v1976, %v2054
        %vm2056 = vcmp.eq.f32.partialorder %v1976, inf
        %v2057 = vsel %vm2056, %v1976, %v2055
        %vm2058 = vcmp.eq.f32.partialorder %v1976, 0.0
        %v2059 = vand.u32 %v1976, 2147483648
        %v2060 = vsel %vm2058, %v2059, %v2057
        %v2061 = vrsqrt.pop %v1978
        %v2062 = vmul.f32 %v1978, %v2061
        %vm2063 = vcmp.eq.f32.partialorder %v1978, inf
        %v2064 = vsel %vm2063, %v1978, %v2062
        %vm2065 = vcmp.eq.f32.partialorder %v1978, 0.0
        %v2066 = vand.u32 %v1978, 2147483648
        %v2067 = vsel %vm2065, %v2066, %v2064
        %v2068 = vrsqrt.pop %v1980
        %v2069 = vmul.f32 %v1980, %v2068
        %vm2070 = vcmp.eq.f32.partialorder %v1980, inf
        %v2071 = vsel %vm2070, %v1980, %v2069
        %vm2072 = vcmp.eq.f32.partialorder %v1980, 0.0
        %v2073 = vand.u32 %v1980, 2147483648
        %v2074 = vsel %vm2072, %v2073, %v2071
        %v2075 = vrsqrt.pop %v1982
        %v2076 = vmul.f32 %v1982, %v2075
        %vm2077 = vcmp.eq.f32.partialorder %v1982, inf
        %v2078 = vsel %vm2077, %v1982, %v2076
        %vm2079 = vcmp.eq.f32.partialorder %v1982, 0.0
        %v2080 = vand.u32 %v1982, 2147483648
        %v2081 = vsel %vm2079, %v2080, %v2078
        %v2082 = vrsqrt.pop %v1984
        %v2083 = vmul.f32 %v1984, %v2082
        %vm2084 = vcmp.eq.f32.partialorder %v1984, inf
        %v2085 = vsel %vm2084, %v1984, %v2083
        %vm2086 = vcmp.eq.f32.partialorder %v1984, 0.0
        %v2087 = vand.u32 %v1984, 2147483648
        %v2088 = vsel %vm2086, %v2087, %v2085
        %v2089 = vrsqrt.pop %v1986
        %v2090 = vmul.f32 %v1986, %v2089
        %vm2091 = vcmp.eq.f32.partialorder %v1986, inf
        %v2092 = vsel %vm2091, %v1986, %v2090
        %vm2093 = vcmp.eq.f32.partialorder %v1986, 0.0
        %v2094 = vand.u32 %v1986, 2147483648
        %v2095 = vsel %vm2093, %v2094, %v2092
        %v2096 = vrsqrt.pop %v1988
        %v2097 = vmul.f32 %v1988, %v2096
        %vm2098 = vcmp.eq.f32.partialorder %v1988, inf
        %v2099 = vsel %vm2098, %v1988, %v2097
        %vm2100 = vcmp.eq.f32.partialorder %v1988, 0.0
        %v2101 = vand.u32 %v1988, 2147483648
        %v2102 = vsel %vm2100, %v2101, %v2099
        %v2103 = vrsqrt.pop %v1990
        %v2104 = vmul.f32 %v1990, %v2103
        %vm2105 = vcmp.eq.f32.partialorder %v1990, inf
        %v2106 = vsel %vm2105, %v1990, %v2104
        %vm2107 = vcmp.eq.f32.partialorder %v1990, 0.0
        %v2108 = vand.u32 %v1990, 2147483648
        %v2109 = vsel %vm2107, %v2108, %v2106
        %v2110 = vrsqrt.pop %v1992
        %v2111 = vmul.f32 %v1992, %v2110
        %vm2112 = vcmp.eq.f32.partialorder %v1992, inf
        %v2113 = vsel %vm2112, %v1992, %v2111
        %vm2114 = vcmp.eq.f32.partialorder %v1992, 0.0
        %v2115 = vand.u32 %v1992, 2147483648
        %v2116 = vsel %vm2114, %v2115, %v2113
        %v2117 = vrsqrt.pop %v1994
        %v2118 = vmul.f32 %v1994, %v2117
        %vm2119 = vcmp.eq.f32.partialorder %v1994, inf
        %v2120 = vsel %vm2119, %v1994, %v2118
        %vm2121 = vcmp.eq.f32.partialorder %v1994, 0.0
        %v2122 = vand.u32 %v1994, 2147483648
        %v2123 = vsel %vm2121, %v2122, %v2120
        %v2124 = vrsqrt.pop %v1996
        %v2125 = vmul.f32 %v1996, %v2124
        %vm2126 = vcmp.eq.f32.partialorder %v1996, inf
        %v2127 = vsel %vm2126, %v1996, %v2125
        %vm2128 = vcmp.eq.f32.partialorder %v1996, 0.0
        %v2129 = vand.u32 %v1996, 2147483648
        %v2130 = vsel %vm2128, %v2129, %v2127
        %v2131 = vrsqrt.pop %v1998
        %v2132 = vmul.f32 %v1998, %v2131
        %vm2133 = vcmp.eq.f32.partialorder %v1998, inf
        %v2134 = vsel %vm2133, %v1998, %v2132
        %vm2135 = vcmp.eq.f32.partialorder %v1998, 0.0
        %v2136 = vand.u32 %v1998, 2147483648
        %v2137 = vsel %vm2135, %v2136, %v2134
        %v2138 = vrsqrt.pop %v2000
        %v2139 = vmul.f32 %v2000, %v2138
        %vm2140 = vcmp.eq.f32.partialorder %v2000, inf
        %v2141 = vsel %vm2140, %v2000, %v2139
        %vm2142 = vcmp.eq.f32.partialorder %v2000, 0.0
        %v2143 = vand.u32 %v2000, 2147483648
        %v2144 = vsel %vm2142, %v2143, %v2141
        %v2145 = vrsqrt.pop %v2002
        %v2146 = vmul.f32 %v2002, %v2145
        %vm2147 = vcmp.eq.f32.partialorder %v2002, inf
        %v2148 = vsel %vm2147, %v2002, %v2146
        %vm2149 = vcmp.eq.f32.partialorder %v2002, 0.0
        %v2150 = vand.u32 %v2002, 2147483648
        %v2151 = vsel %vm2149, %v2150, %v2148
        %v2152 = vrsqrt.pop %v2004
        %v2153 = vmul.f32 %v2004, %v2152
        %vm2154 = vcmp.eq.f32.partialorder %v2004, inf
        %v2155 = vsel %vm2154, %v2004, %v2153
        %vm2156 = vcmp.eq.f32.partialorder %v2004, 0.0
        %v2157 = vand.u32 %v2004, 2147483648
        %v2158 = vsel %vm2156, %v2157, %v2155
        %v2159 = vrsqrt.pop %v2006
        %v2160 = vmul.f32 %v2006, %v2159
        %vm2161 = vcmp.eq.f32.partialorder %v2006, inf
        %v2162 = vsel %vm2161, %v2006, %v2160
        %vm2163 = vcmp.eq.f32.partialorder %v2006, 0.0
        %v2164 = vand.u32 %v2006, 2147483648
        %v2165 = vsel %vm2163, %v2164, %v2162
        %v2166 = vrsqrt.pop %v2008
        %v2167 = vmul.f32 %v2008, %v2166
        %vm2168 = vcmp.eq.f32.partialorder %v2008, inf
        %v2169 = vsel %vm2168, %v2008, %v2167
        %vm2170 = vcmp.eq.f32.partialorder %v2008, 0.0
        %v2171 = vand.u32 %v2008, 2147483648
        %v2172 = vsel %vm2170, %v2171, %v2169
        %v2173 = vrsqrt.pop %v2010
        %v2174 = vmul.f32 %v2010, %v2173
        %vm2175 = vcmp.eq.f32.partialorder %v2010, inf
        %v2176 = vsel %vm2175, %v2010, %v2174
        %vm2177 = vcmp.eq.f32.partialorder %v2010, 0.0
        %v2178 = vand.u32 %v2010, 2147483648
        %v2179 = vsel %vm2177, %v2178, %v2176
        %v2180 = vrsqrt.pop %v2012
        %v2181 = vmul.f32 %v2012, %v2180
        %vm2182 = vcmp.eq.f32.partialorder %v2012, inf
        %v2183 = vsel %vm2182, %v2012, %v2181
        %vm2184 = vcmp.eq.f32.partialorder %v2012, 0.0
        %v2185 = vand.u32 %v2012, 2147483648
        %v2186 = vsel %vm2184, %v2185, %v2183
        %v2187 = vrsqrt.pop %v2014
        %v2188 = vmul.f32 %v2014, %v2187
        %vm2189 = vcmp.eq.f32.partialorder %v2014, inf
        %v2190 = vsel %vm2189, %v2014, %v2188
        %vm2191 = vcmp.eq.f32.partialorder %v2014, 0.0
        %v2192 = vand.u32 %v2014, 2147483648
        %v2193 = vsel %vm2191, %v2192, %v2190
        %v2194 = vrsqrt.pop %v2016
        %v2195 = vmul.f32 %v2016, %v2194
        %vm2196 = vcmp.eq.f32.partialorder %v2016, inf
        %v2197 = vsel %vm2196, %v2016, %v2195
        %vm2198 = vcmp.eq.f32.partialorder %v2016, 0.0
        %v2199 = vand.u32 %v2016, 2147483648
        %v2200 = vsel %vm2198, %v2199, %v2197
        %v2201 = vrsqrt.pop %v2018
        %v2202 = vmul.f32 %v2018, %v2201
        %vm2203 = vcmp.eq.f32.partialorder %v2018, inf
        %v2204 = vsel %vm2203, %v2018, %v2202
        %vm2205 = vcmp.eq.f32.partialorder %v2018, 0.0
        %v2206 = vand.u32 %v2018, 2147483648
        %v2207 = vsel %vm2205, %v2206, %v2204
        %v2208 = vrsqrt.pop %v2020
        %v2209 = vmul.f32 %v2020, %v2208
        %vm2210 = vcmp.eq.f32.partialorder %v2020, inf
        %v2211 = vsel %vm2210, %v2020, %v2209
        %vm2212 = vcmp.eq.f32.partialorder %v2020, 0.0
        %v2213 = vand.u32 %v2020, 2147483648
        %v2214 = vsel %vm2212, %v2213, %v2211
        %v2215 = vrsqrt.pop %v2022
        %v2216 = vmul.f32 %v2022, %v2215
        %vm2217 = vcmp.eq.f32.partialorder %v2022, inf
        %v2218 = vsel %vm2217, %v2022, %v2216
        %vm2219 = vcmp.eq.f32.partialorder %v2022, 0.0
        %v2220 = vand.u32 %v2022, 2147483648
        %v2221 = vsel %vm2219, %v2220, %v2218
        %v2222 = vrsqrt.pop %v2024
        %v2223 = vmul.f32 %v2024, %v2222
        %vm2224 = vcmp.eq.f32.partialorder %v2024, inf
        %v2225 = vsel %vm2224, %v2024, %v2223
        %vm2226 = vcmp.eq.f32.partialorder %v2024, 0.0
        %v2227 = vand.u32 %v2024, 2147483648
        %v2228 = vsel %vm2226, %v2227, %v2225
        %v2229 = vrsqrt.pop %v2026
        %v2230 = vmul.f32 %v2026, %v2229
        %vm2231 = vcmp.eq.f32.partialorder %v2026, inf
        %v2232 = vsel %vm2231, %v2026, %v2230
        %vm2233 = vcmp.eq.f32.partialorder %v2026, 0.0
        %v2234 = vand.u32 %v2026, 2147483648
        %v2235 = vsel %vm2233, %v2234, %v2232
        %v2236 = vrsqrt.pop %v2028
        %v2237 = vmul.f32 %v2028, %v2236
        %vm2238 = vcmp.eq.f32.partialorder %v2028, inf
        %v2239 = vsel %vm2238, %v2028, %v2237
        %vm2240 = vcmp.eq.f32.partialorder %v2028, 0.0
        %v2241 = vand.u32 %v2028, 2147483648
        %v2242 = vsel %vm2240, %v2241, %v2239
        %v2243 = vrsqrt.pop %v2030
        %v2244 = vmul.f32 %v2030, %v2243
        %vm2245 = vcmp.eq.f32.partialorder %v2030, inf
        %v2246 = vsel %vm2245, %v2030, %v2244
        %vm2247 = vcmp.eq.f32.partialorder %v2030, 0.0
        %v2248 = vand.u32 %v2030, 2147483648
        %v2249 = vsel %vm2247, %v2248, %v2246
        %v2250 = vrsqrt.pop %v2032
        %v2251 = vmul.f32 %v2032, %v2250
        %vm2252 = vcmp.eq.f32.partialorder %v2032, inf
        %v2253 = vsel %vm2252, %v2032, %v2251
        %vm2254 = vcmp.eq.f32.partialorder %v2032, 0.0
        %v2255 = vand.u32 %v2032, 2147483648
        %v2256 = vsel %vm2254, %v2255, %v2253
        %v2257 = vadd.f32 %v2039, 1e-07
        %v2258 = vadd.f32 %v2046, 1e-07
        %v2259 = vadd.f32 %v2053, 1e-07
        %v2260 = vadd.f32 %v2060, 1e-07
        %v2261 = vadd.f32 %v2067, 1e-07
        %v2262 = vadd.f32 %v2074, 1e-07
        %v2263 = vadd.f32 %v2081, 1e-07
        %v2264 = vadd.f32 %v2088, 1e-07
        %v2265 = vadd.f32 %v2095, 1e-07
        %v2266 = vadd.f32 %v2102, 1e-07
        %v2267 = vadd.f32 %v2109, 1e-07
        %v2268 = vadd.f32 %v2116, 1e-07
        %v2269 = vadd.f32 %v2123, 1e-07
        %v2270 = vadd.f32 %v2130, 1e-07
        %v2271 = vadd.f32 %v2137, 1e-07
        %v2272 = vadd.f32 %v2144, 1e-07
        %v2273 = vadd.f32 %v2151, 1e-07
        %v2274 = vadd.f32 %v2158, 1e-07
        %v2275 = vadd.f32 %v2165, 1e-07
        %v2276 = vadd.f32 %v2172, 1e-07
        %v2277 = vadd.f32 %v2179, 1e-07
        %v2278 = vadd.f32 %v2186, 1e-07
        %v2279 = vadd.f32 %v2193, 1e-07
        %v2280 = vadd.f32 %v2200, 1e-07
        %v2281 = vadd.f32 %v2207, 1e-07
        %v2282 = vadd.f32 %v2214, 1e-07
        %v2283 = vadd.f32 %v2221, 1e-07
        %v2284 = vadd.f32 %v2228, 1e-07
        %v2285 = vadd.f32 %v2235, 1e-07
        %v2286 = vadd.f32 %v2242, 1e-07
        %v2287 = vadd.f32 %v2249, 1e-07
        %v2288 = vadd.f32 %v2256, 1e-07
        %v2289 = vrcp.pop %v2257
        %v2290 = vrcp.pop %v2258
        %v2291 = vrcp.pop %v2259
        %v2292 = vrcp.pop %v2260
        %v2293 = vrcp.pop %v2261
        %v2294 = vrcp.pop %v2262
        %v2295 = vrcp.pop %v2263
        %v2296 = vrcp.pop %v2264
        %v2297 = vrcp.pop %v2265
        %v2298 = vrcp.pop %v2266
        %v2299 = vrcp.pop %v2267
        %v2300 = vrcp.pop %v2268
        %v2301 = vrcp.pop %v2269
        %v2302 = vrcp.pop %v2270
        %v2303 = vrcp.pop %v2271
        %v2304 = vrcp.pop %v2272
        %v2305 = vrcp.pop %v2273
        %v2306 = vrcp.pop %v2274
        %v2307 = vrcp.pop %v2275
        %v2308 = vrcp.pop %v2276
        %v2309 = vrcp.pop %v2277
        %v2310 = vrcp.pop %v2278
        %v2311 = vrcp.pop %v2279
        %v2312 = vrcp.pop %v2280
        %v2313 = vrcp.pop %v2281
        %v2314 = vrcp.pop %v2282
        %v2315 = vrcp.pop %v2283
        %v2316 = vrcp.pop %v2284
        %v2317 = vrcp.pop %v2285
        %v2318 = vrcp.pop %v2286
        %v2319 = vrcp.pop %v2287
        %v2320 = vrcp.pop %v2288
        %v2321 = vmul.f32 %v1905, %v2289
        %v2322 = vmul.f32 %v1906, %v2290
        %v2323 = vmul.f32 %v1907, %v2291
        %v2324 = vmul.f32 %v1908, %v2292
        %v2325 = vmul.f32 %v1909, %v2293
        %v2326 = vmul.f32 %v1910, %v2294
        %v2327 = vmul.f32 %v1911, %v2295
        %v2328 = vmul.f32 %v1912, %v2296
        %v2329 = vmul.f32 %v1913, %v2297
        %v2330 = vmul.f32 %v1914, %v2298
        %v2331 = vmul.f32 %v1915, %v2299
        %v2332 = vmul.f32 %v1916, %v2300
        %v2333 = vmul.f32 %v1917, %v2301
        %v2334 = vmul.f32 %v1918, %v2302
        %v2335 = vmul.f32 %v1919, %v2303
        %v2336 = vmul.f32 %v1920, %v2304
        %v2337 = vmul.f32 %v1921, %v2305
        %v2338 = vmul.f32 %v1922, %v2306
        %v2339 = vmul.f32 %v1923, %v2307
        %v2340 = vmul.f32 %v1924, %v2308
        %v2341 = vmul.f32 %v1925, %v2309
        %v2342 = vmul.f32 %v1926, %v2310
        %v2343 = vmul.f32 %v1927, %v2311
        %v2344 = vmul.f32 %v1928, %v2312
        %v2345 = vmul.f32 %v1929, %v2313
        %v2346 = vmul.f32 %v1930, %v2314
        %v2347 = vmul.f32 %v1931, %v2315
        %v2348 = vmul.f32 %v1932, %v2316
        %v2349 = vmul.f32 %v1933, %v2317
        %v2350 = vmul.f32 %v1934, %v2318
        %v2351 = vmul.f32 %v1935, %v2319
        %v2352 = vmul.f32 %v1936, %v2320
        %s2353 = scalar_lea.vmem %s210, 512 [#allocation2]
        %2354 = vst [vmem:[%s2353] sm:$0xff] %v2321
        %2355 = vst [vmem:[%s2353 + $0x8] sm:$0xff] %v2322
        %2356 = vst [vmem:[%s2353 + $0x10] sm:$0xff] %v2323
        %2357 = vst [vmem:[%s2353 + $0x18] sm:$0xff] %v2324
        %2358 = vst [vmem:[%s2353 + $0x20] sm:$0xff] %v2325
        %2359 = vst [vmem:[%s2353 + $0x28] sm:$0xff] %v2326
        %2360 = vst [vmem:[%s2353 + $0x30] sm:$0xff] %v2327
        %2361 = vst [vmem:[%s2353 + $0x38] sm:$0xff] %v2328
        %2362 = vst [vmem:[%s2353 + $0x40] sm:$0xff] %v2329
        %2363 = vst [vmem:[%s2353 + $0x48] sm:$0xff] %v2330
        %2364 = vst [vmem:[%s2353 + $0x50] sm:$0xff] %v2331
        %2365 = vst [vmem:[%s2353 + $0x58] sm:$0xff] %v2332
        %2366 = vst [vmem:[%s2353 + $0x60] sm:$0xff] %v2333
        %2367 = vst [vmem:[%s2353 + $0x68] sm:$0xff] %v2334
        %2368 = vst [vmem:[%s2353 + $0x70] sm:$0xff] %v2335
        %2369 = vst [vmem:[%s2353 + $0x78] sm:$0xff] %v2336
        %2370 = vst [vmem:[%s2353 + $0x80] sm:$0xff] %v2337
        %2371 = vst [vmem:[%s2353 + $0x88] sm:$0xff] %v2338
        %2372 = vst [vmem:[%s2353 + $0x90] sm:$0xff] %v2339
        %2373 = vst [vmem:[%s2353 + $0x98] sm:$0xff] %v2340
        %2374 = vst [vmem:[%s2353 + $0xa0] sm:$0xff] %v2341
        %2375 = vst [vmem:[%s2353 + $0xa8] sm:$0xff] %v2342
        %2376 = vst [vmem:[%s2353 + $0xb0] sm:$0xff] %v2343
        %2377 = vst [vmem:[%s2353 + $0xb8] sm:$0xff] %v2344
        %2378 = vst [vmem:[%s2353 + $0xc0] sm:$0xff] %v2345
        %2379 = vst [vmem:[%s2353 + $0xc8] sm:$0xff] %v2346
        %2380 = vst [vmem:[%s2353 + $0xd0] sm:$0xff] %v2347
        %2381 = vst [vmem:[%s2353 + $0xd8] sm:$0xff] %v2348
        %2382 = vst [vmem:[%s2353 + $0xe0] sm:$0xff] %v2349
        %2383 = vst [vmem:[%s2353 + $0xe8] sm:$0xff] %v2350
        %2384 = vst [vmem:[%s2353 + $0xf0] sm:$0xff] %v2351
        %2385 = vst [vmem:[%s2353 + $0xf8] sm:$0xff] %v2352
        %s2386 = sand.u32 %s117, 1
        %s2387 = scalar_lea.sflag [#allocation3], %s2386
        %s2388 = sand.u32 %s117, 1
        %s2389 = smul.addr %s2388, 768
        %s2390 = scalar_lea.vmem [#allocation2], %s2389
        // Predicated region
        $region33: #{tpu_custom_call.1} parent=31 // pred_check
          %p2391 = pneg %p127
        $region34: #{tpu_custom_call.1} parent=31 // pred_check_branch
          %2393 = sbr.rel (%p2391) target = $region36
        $region35: #{tpu_custom_call.1} parent=31 // pred_region
          %s2394 = smul.u32 3, %s21
          %s2395 = smul.u32 32, %s22
          %s2397 = ssub.s32 12288, 12288
          %2398 = vsyncadd %s2387, %s2397
          %s2399 = smul.addr %s2394, 32
          %s2400 = sadd.s32 %s2395, %s2399
          %s2401 = smul.addr %s2400, 128
          %s2402 = scalar_lea.hbm %s3, %s2401
          %s2403 = sshll.u32 %s2390, 4
          %s2404 = int_to_ptr.vmem [resolvable:$true] %s2403
          %2409 = dma.vmem_to_hbm [thread:$0]  %s2404, 12288, %s2402, %s2387, 128, 128, 8
        $region36: #{tpu_custom_call.1} parent=31 // pred_fallthru
          _
      $region32: #{tpu_custom_call.1} parent=5 // pred_fallthru
        _
      %p2410 = scmp.le.s32.totalorder 2, %s12
      // Predicated region
      $region37: #{tpu_custom_call.1} parent=5 // pred_check
        %p2411 = pneg %p2410
      $region38: #{tpu_custom_call.1} parent=5 // pred_check_branch
        %2413 = sbr.rel (%p2411) target = $region40
      $region39: #{tpu_custom_call.1} parent=5 // pred_region
        %s2414 = ssub.s32 %s12, 2
        // Predicated region
        $region41: #{tpu_custom_call.1} parent=39 // pred_check
          %p2415 = pneg %p133
        $region42: #{tpu_custom_call.1} parent=39 // pred_check_branch
          %2417 = sbr.rel (%p2415) target = $region44
        $region43: #{tpu_custom_call.1} parent=39 // pred_region
          %s2418 = sand.u32 %s118, 1
          %s2419 = scalar_lea.sflag [#allocation3], %s2418
          %s2420 = sand.u32 %s118, 1
          %s2421 = smul.addr %s2420, 768
          %s2422 = scalar_lea.vmem [#allocation2], %s2421
          %2423 = dma.done %s2419, 12288
        $region44: #{tpu_custom_call.1} parent=39 // pred_fallthru
          _
      $region40: #{tpu_custom_call.1} parent=5 // pred_fallthru
        _
    $region6: #{tpu_custom_call.1} parent=1 // loop_footer
      %s16 = sadd.s32 1, %s12
    $region7: #{tpu_custom_call.1} parent=1 // loop_footer_branch
      %11 = sbr.rel target = $region3
    $region8: #{tpu_custom_call.1} parent=1 // loop_exit
      _
    %2424 = vsyncpa [#allocation3], 1
    %s2425 = scalar_lea.sflag [#allocation3], 1
    %2426 = vsyncpa %s2425, 1

</llo_original>
